<compile_context>
chip_gen: v7x
topology: tpu7x:2x2x1
jax: 0.10.0
libtpu: 0.0.40
codegen_flags: <defaults>
</compile_context>

<pallas_src>
import math

import jax
import jax.numpy as jnp
from jax.experimental import pallas as pl
from jax.experimental.pallas import tpu as pltpu


def quantum_llm_kernel(xr_ref, wp_ref, bp_ref,
                       g_r_ref, g_i_ref, bt_r_ref, bt_i_ref,
                       wo_r_ref, wo_i_ref, bo_ref,
                       out_ref,
                       nr_ref, ni_ref):
    """One (batch-block, vocab-tile) grid step."""
    v = pl.program_id(1)
    BB, S, D = xr_ref.shape
    N = BB * S

    # Heavy token-wise + attention work runs once per batch-block (v == 0);
    # the normalized real/imag halves persist in VMEM scratch across v tiles.
    @pl.when(v == 0)
    def _state_attention_layernorm():
        x3 = xr_ref[...]                          # (BB, S, D) f32
        x = x3.reshape(N, D)                      # fold batch into sublane rows

        # --- SimpleQuantumState: learned phase rotation of the embedding ---
        bp = bp_ref[...]                          # (1, D), read once
        phase = jnp.tanh(
            jnp.dot(x, wp_ref[...], preferred_element_type=jnp.float32) + bp)
        sr = x * jnp.cos(phase)                   # (N, D)
        si = x * jnp.sin(phase)

        # --- BasicQuantumAttention: complex dot-product attention (q=k=v) ---
        sr3 = sr.reshape(BB, S, D)
        si3 = si.reshape(BB, S, D)
        scale = 1.0 / math.sqrt(D)
        scores = (jnp.einsum('bqd,bkd->bqk', sr3, sr3,
                             preferred_element_type=jnp.float32)
                  + jnp.einsum('bqd,bkd->bqk', si3, si3,
                               preferred_element_type=jnp.float32)) * scale
        scores = scores - jnp.max(scores, axis=-1, keepdims=True)
        p = jnp.exp(scores)
        p = p * pl.reciprocal(jnp.sum(p, axis=-1, keepdims=True), approx=True)
        attn_r = jnp.einsum('bqk,bkd->bqd', p, sr3,
                            preferred_element_type=jnp.float32).reshape(N, D)
        attn_i = jnp.einsum('bqk,bkd->bqd', p, si3,
                            preferred_element_type=jnp.float32).reshape(N, D)

        # --- LayerNorm over the virtual concat [attn_r, attn_i] (no concat) ---
        d2 = 2.0 * D
        mean = (jnp.sum(attn_r, axis=-1, keepdims=True)
                + jnp.sum(attn_i, axis=-1, keepdims=True)) / d2
        dr = attn_r - mean
        di = attn_i - mean
        var = (jnp.sum(dr * dr, axis=-1, keepdims=True)
               + jnp.sum(di * di, axis=-1, keepdims=True)) / d2
        inv = jax.lax.rsqrt(var + 1e-5)
        nr = dr * inv * g_r_ref[...] + bt_r_ref[...]
        ni = di * inv * g_i_ref[...] + bt_i_ref[...]

        # bf16 matmul operands (f32 accumulation below); cast once, reuse per v.
        nr_ref[...] = nr.astype(nr_ref.dtype)
        ni_ref[...] = ni.astype(ni_ref.dtype)

    # --- Output projection for this vocab tile: two D-wide matmuls, f32 acc ---
    bo = bo_ref[...]                              # (1, TV)
    logits = (jnp.dot(nr_ref[...], wo_r_ref[...],
                      preferred_element_type=jnp.float32)
              + jnp.dot(ni_ref[...], wo_i_ref[...],
                        preferred_element_type=jnp.float32)
              + bo)                               # (N, TV) f32
    out_ref[...] = logits.reshape(out_ref.shape)


def init_params(key, dim, vocab):
    k = jax.random.split(key, 6)
    d2 = dim * 2
    return {
        # QuantumEmbedding (phase-based): amplitude & phase tables
        "emb_amp":   0.02 * jax.random.normal(k[0], (vocab, dim), jnp.float32),
        "emb_phase": jax.random.uniform(k[1], (vocab, dim), jnp.float32,
                                        minval=-jnp.pi, maxval=jnp.pi),
        # SimpleQuantumState
        "w_phase": 0.02 * jax.random.normal(k[2], (dim, dim), jnp.float32),
        "b_phase": jnp.zeros((1, dim), jnp.float32),
        # LayerNorm(dim * 2)
        "ln_gamma": jnp.ones((1, d2), jnp.float32),
        "ln_beta":  jnp.zeros((1, d2), jnp.float32),
        # output Linear: nn.init.normal_(std=0.02), zero bias
        "w_out": 0.02 * jax.random.normal(k[3], (d2, vocab), jnp.float32),
        "b_out": jnp.zeros((1, vocab), jnp.float32),
    }


def _batch_block(batch, seq):
    """Largest divisor of `batch` keeping BB*S around <=256 rows per block,
    preferring blocks whose row count is a multiple of 8 (full sublanes)."""
    cap = max(1, 256 // max(seq, 1))
    best = 1
    for d in range(min(batch, cap), 0, -1):
        if batch % d == 0:
            if (d * seq) % 8 == 0:
                return d
            best = max(best, d) if best == 1 else best
    return best


def _vocab_tile(vocab):
    """Lane-dense vocab tile: full V if small, else a multiple-of-128 divisor."""
    if vocab <= 2048:
        return vocab
    for tv in range(2048, 127, -128):
        if vocab % tv == 0:
            return tv
    return vocab


@jax.jit
def quantum_llm_forward(x_tokens, params):
    # QuantumEmbedding: gather + phase decomposition (gather-heavy glue stays
    # in XLA where the embedding-table gather is already well handled).
    amp = jnp.take(params["emb_amp"], x_tokens, axis=0)     # (B, S, D)
    phs = jnp.take(params["emb_phase"], x_tokens, axis=0)   # (B, S, D)
    real_embed = amp * jnp.cos(phs)
    # imag_embed = amp * jnp.sin(phs)   # unused in the reference forward

    B, S, D = real_embed.shape
    V = params["w_out"].shape[1]

    BB = _batch_block(B, S)
    TV = _vocab_tile(V)

    # Split params into real/imag halves outside the kernel (free) so the
    # kernel never concatenates or lane-slices at a non-128 offset.
    wo = params["w_out"]
    wo_r = wo[:D].astype(jnp.bfloat16)            # (D, V) bf16 at rest
    wo_i = wo[D:].astype(jnp.bfloat16)
    g_r = params["ln_gamma"][:, :D]
    g_i = params["ln_gamma"][:, D:]
    bt_r = params["ln_beta"][:, :D]
    bt_i = params["ln_beta"][:, D:]
    bo = params["b_out"]

    flops = B * (2 * S * D * D          # phase projection
                 + 8 * S * S * D        # scores + attention outputs (real+imag)
                 + 4 * S * D * V)       # output projection (two halves)
    transcendentals = B * (3 * S * D + S * S + 2 * S)
    bytes_accessed = (4 * real_embed.size + 2 * wo.size
                      + 4 * (D * D + 6 * D + V) + 4 * B * S * V)
    cost = pl.CostEstimate(flops=flops,
                           transcendentals=transcendentals,
                           bytes_accessed=bytes_accessed)

    return pl.pallas_call(
        quantum_llm_kernel,
        out_shape=jax.ShapeDtypeStruct((B, S, V), jnp.float32),
        grid_spec=pltpu.PrefetchScalarGridSpec(
            num_scalar_prefetch=0,
            grid=(B // BB, V // TV),
            in_specs=[
                pl.BlockSpec((BB, S, D), lambda b, v: (b, 0, 0)),   # real_embed
                pl.BlockSpec((D, D),     lambda b, v: (0, 0)),      # w_phase
                pl.BlockSpec((1, D),     lambda b, v: (0, 0)),      # b_phase
                pl.BlockSpec((1, D),     lambda b, v: (0, 0)),      # gamma real
                pl.BlockSpec((1, D),     lambda b, v: (0, 0)),      # gamma imag
                pl.BlockSpec((1, D),     lambda b, v: (0, 0)),      # beta real
                pl.BlockSpec((1, D),     lambda b, v: (0, 0)),      # beta imag
                pl.BlockSpec((D, TV),    lambda b, v: (0, v)),      # w_out real half
                pl.BlockSpec((D, TV),    lambda b, v: (0, v)),      # w_out imag half
                pl.BlockSpec((1, TV),    lambda b, v: (0, v)),      # b_out tile
            ],
            out_specs=pl.BlockSpec((BB, S, TV), lambda b, v: (b, 0, v)),
            scratch_shapes=[pltpu.VMEM((BB * S, D), jnp.bfloat16),   # normed real
                            pltpu.VMEM((BB * S, D), jnp.bfloat16)],  # normed imag
        ),
        compiler_params=pltpu.CompilerParams(
            dimension_semantics=("parallel", "arbitrary"),
            vmem_limit_bytes=32 * 1024 * 1024),
        cost_estimate=cost,
    )(real_embed, params["w_phase"], params["b_phase"],
      g_r, g_i, bt_r, bt_i, wo_r, wo_i, bo)


if __name__ == "__main__":
    B, S, DIM, VOCAB = 2, 8, 32, 128

    key = jax.random.PRNGKey(0)
    k_tok, k_par = jax.random.split(key)
    params = init_params(k_par, DIM, VOCAB)
    x = jax.random.randint(k_tok, (B, S), 0, VOCAB, dtype=jnp.int32)

    logits = quantum_llm_forward(x, params)
    jax.block_until_ready(logits)
    assert logits.shape == (B, S, VOCAB) and logits.dtype == jnp.float32
    assert bool(jnp.all(jnp.isfinite(logits)))
    print("KERNEL_OK")
</pallas_src>

<mosaic_0001>
module attributes {stable_mosaic.version = 11 : i64} {
  func.func @quantum_llm_kernel(%arg0: i32, %arg1: i32, %arg2: memref<2x8x32xf32, #tpu.memory_space<vmem>>, %arg3: memref<32x32xf32, #tpu.memory_space<vmem>>, %arg4: memref<1x32xf32, #tpu.memory_space<vmem>>, %arg5: memref<1x32xf32, #tpu.memory_space<vmem>>, %arg6: memref<1x32xf32, #tpu.memory_space<vmem>>, %arg7: memref<1x32xf32, #tpu.memory_space<vmem>>, %arg8: memref<1x32xf32, #tpu.memory_space<vmem>>, %arg9: memref<32x128xbf16, #tpu.memory_space<vmem>>, %arg10: memref<32x128xbf16, #tpu.memory_space<vmem>>, %arg11: memref<1x128xf32, #tpu.memory_space<vmem>>, %arg12: memref<2x8x128xf32, #tpu.memory_space<vmem>>, %arg13: memref<16x32xbf16, #tpu.memory_space<vmem>>, %arg14: memref<16x32xbf16, #tpu.memory_space<vmem>>) attributes {dimension_semantics = [#tpu.dimension_semantics<parallel>, #tpu.dimension_semantics<arbitrary>], iteration_bounds = array<i64: 1, 1>, scalar_prefetch = 0 : i64, scratch_operands = 2 : i64, tpu.core_type = #tpu.core_type<tc>, window_params = [{transform_indices = @transform_0, window_bounds = array<i64: 2, 8, 32>}, {pipeline_mode = #tpu.pipeline_mode<synchronous>, transform_indices = @transform_1, window_bounds = array<i64: 32, 32>}, {pipeline_mode = #tpu.pipeline_mode<synchronous>, transform_indices = @transform_2, window_bounds = array<i64: 1, 32>}, {pipeline_mode = #tpu.pipeline_mode<synchronous>, transform_indices = @transform_3, window_bounds = array<i64: 1, 32>}, {pipeline_mode = #tpu.pipeline_mode<synchronous>, transform_indices = @transform_4, window_bounds = array<i64: 1, 32>}, {pipeline_mode = #tpu.pipeline_mode<synchronous>, transform_indices = @transform_5, window_bounds = array<i64: 1, 32>}, {pipeline_mode = #tpu.pipeline_mode<synchronous>, transform_indices = @transform_6, window_bounds = array<i64: 1, 32>}, {transform_indices = @transform_7, window_bounds = array<i64: 32, 128>}, {transform_indices = @transform_8, window_bounds = array<i64: 32, 128>}, {transform_indices = @transform_9, window_bounds = array<i64: 1, 128>}, {transform_indices = @transform_10, window_bounds = array<i64: 2, 8, 128>}]} {
    %c0_i32 = arith.constant 0 : i32
    %0 = arith.cmpi eq, %arg1, %c0_i32 : i32
    %1 = arith.extui %0 : i1 to i32
    %c0_i32_0 = arith.constant 0 : i32
    %2 = arith.cmpi ne, %1, %c0_i32_0 : i32
    scf.if %2 {
      %c0_14 = arith.constant 0 : index
      %c0_15 = arith.constant 0 : index
      %c0_16 = arith.constant 0 : index
      %15 = vector.load %arg2[%c0_14, %c0_15, %c0_16] : memref<2x8x32xf32, #tpu.memory_space<vmem>>, vector<2x8x32xf32>
      %16 = vector.shape_cast %15 : vector<2x8x32xf32> to vector<16x32xf32>
      %c0_17 = arith.constant 0 : index
      %c0_18 = arith.constant 0 : index
      %17 = vector.load %arg4[%c0_17, %c0_18] : memref<1x32xf32, #tpu.memory_space<vmem>>, vector<1x32xf32>
      %c0_19 = arith.constant 0 : index
      %c0_20 = arith.constant 0 : index
      %18 = vector.load %arg3[%c0_19, %c0_20] : memref<32x32xf32, #tpu.memory_space<vmem>>, vector<32x32xf32>
      %cst_21 = arith.constant dense<0.000000e+00> : vector<16x32xf32>
      %19 = tpu.matmul %16, %18, %cst_21 {dimension_numbers = #tpu.dot_dimension_numbers<[1], [0], [0], [1], [0, 0, 1, 1], [], []>} : vector<16x32xf32>, vector<32x32xf32>, vector<16x32xf32> -> vector<16x32xf32>
      %20 = vector.broadcast %17 : vector<1x32xf32> to vector<16x32xf32>
      %21 = arith.addf %19, %20 : vector<16x32xf32>
      %22 = math.tanh %21 : vector<16x32xf32>
      %23 = math.cos %22 : vector<16x32xf32>
      %24 = arith.mulf %16, %23 : vector<16x32xf32>
      %25 = math.sin %22 : vector<16x32xf32>
      %26 = arith.mulf %16, %25 : vector<16x32xf32>
      %27 = vector.shape_cast %24 : vector<16x32xf32> to vector<2x8x32xf32>
      %28 = vector.shape_cast %26 : vector<16x32xf32> to vector<2x8x32xf32>
      "tpu.trace_start"() <{level = 10 : i32, message = "bqd,bkd->bqk"}> : () -> ()
      %cst_22 = arith.constant dense<0.000000e+00> : vector<2x8x8xf32>
      %29 = tpu.matmul %27, %27, %cst_22 {dimension_numbers = #tpu.dot_dimension_numbers<[2], [2], [1], [1], [0, 0, 0, 1, 1, 1], [0], [0]>} : vector<2x8x32xf32>, vector<2x8x32xf32>, vector<2x8x8xf32> -> vector<2x8x8xf32>
      %cst_23 = arith.constant dense<0.000000e+00> : vector<2x8x8xf32>
      %30 = tpu.matmul %28, %28, %cst_23 {dimension_numbers = #tpu.dot_dimension_numbers<[2], [2], [1], [1], [0, 0, 0, 1, 1, 1], [0], [0]>} : vector<2x8x32xf32>, vector<2x8x32xf32>, vector<2x8x8xf32> -> vector<2x8x8xf32>
      "tpu.trace_stop"() : () -> ()
      %31 = arith.addf %29, %30 : vector<2x8x8xf32>
      %cst_24 = arith.constant 0.176776692 : f32
      %32 = vector.broadcast %cst_24 : f32 to vector<2x8x8xf32>
      %33 = arith.mulf %31, %32 : vector<2x8x8xf32>
      %cst_25 = arith.constant dense<0xFF800000> : vector<2x8xf32>
      %34 = vector.multi_reduction <maximumf>, %33, %cst_25 [2] : vector<2x8x8xf32> to vector<2x8xf32>
      %35 = vector.shape_cast %34 : vector<2x8xf32> to vector<2x8x1xf32>
      %36 = vector.broadcast %35 : vector<2x8x1xf32> to vector<2x8x8xf32>
      %37 = arith.subf %33, %36 : vector<2x8x8xf32>
      %38 = math.exp %37 : vector<2x8x8xf32>
      %cst_26 = arith.constant dense<0.000000e+00> : vector<2x8xf32>
      %39 = vector.multi_reduction <add>, %38, %cst_26 [2] : vector<2x8x8xf32> to vector<2x8xf32>
      %40 = vector.shape_cast %39 : vector<2x8xf32> to vector<2x8x1xf32>
      %41 = tpu.reciprocal %40 {approx = true} : vector<2x8x1xf32> -> vector<2x8x1xf32>
      %42 = vector.broadcast %41 : vector<2x8x1xf32> to vector<2x8x8xf32>
      %43 = arith.mulf %38, %42 : vector<2x8x8xf32>
      "tpu.trace_start"() <{level = 10 : i32, message = "bqk,bkd->bqd"}> : () -> ()
      %cst_27 = arith.constant dense<0.000000e+00> : vector<2x8x32xf32>
      %44 = tpu.matmul %43, %27, %cst_27 {dimension_numbers = #tpu.dot_dimension_numbers<[2], [1], [1], [2], [0, 0, 0, 1, 1, 2], [0], [0]>} : vector<2x8x8xf32>, vector<2x8x32xf32>, vector<2x8x32xf32> -> vector<2x8x32xf32>
      "tpu.trace_stop"() : () -> ()
      %45 = vector.shape_cast %44 : vector<2x8x32xf32> to vector<16x32xf32>
      "tpu.trace_start"() <{level = 10 : i32, message = "bqk,bkd->bqd"}> : () -> ()
      %cst_28 = arith.constant dense<0.000000e+00> : vector<2x8x32xf32>
      %46 = tpu.matmul %43, %28, %cst_28 {dimension_numbers = #tpu.dot_dimension_numbers<[2], [1], [1], [2], [0, 0, 0, 1, 1, 2], [0], [0]>} : vector<2x8x8xf32>, vector<2x8x32xf32>, vector<2x8x32xf32> -> vector<2x8x32xf32>
      "tpu.trace_stop"() : () -> ()
      %47 = vector.shape_cast %46 : vector<2x8x32xf32> to vector<16x32xf32>
      %cst_29 = arith.constant dense<0.000000e+00> : vector<16xf32>
      %48 = vector.multi_reduction <add>, %45, %cst_29 [1] : vector<16x32xf32> to vector<16xf32>
      %49 = vector.shape_cast %48 : vector<16xf32> to vector<16x1xf32>
      %cst_30 = arith.constant dense<0.000000e+00> : vector<16xf32>
      %50 = vector.multi_reduction <add>, %47, %cst_30 [1] : vector<16x32xf32> to vector<16xf32>
      %51 = vector.shape_cast %50 : vector<16xf32> to vector<16x1xf32>
      %52 = arith.addf %49, %51 : vector<16x1xf32>
      %cst_31 = arith.constant 6.400000e+01 : f32
      %53 = vector.broadcast %cst_31 : f32 to vector<16x1xf32>
      %54 = arith.divf %52, %53 : vector<16x1xf32>
      %55 = vector.broadcast %54 : vector<16x1xf32> to vector<16x32xf32>
      %56 = arith.subf %45, %55 : vector<16x32xf32>
      %57 = vector.broadcast %54 : vector<16x1xf32> to vector<16x32xf32>
      %58 = arith.subf %47, %57 : vector<16x32xf32>
      %59 = arith.mulf %56, %56 : vector<16x32xf32>
      %cst_32 = arith.constant dense<0.000000e+00> : vector<16xf32>
      %60 = vector.multi_reduction <add>, %59, %cst_32 [1] : vector<16x32xf32> to vector<16xf32>
      %61 = vector.shape_cast %60 : vector<16xf32> to vector<16x1xf32>
      %62 = arith.mulf %58, %58 : vector<16x32xf32>
      %cst_33 = arith.constant dense<0.000000e+00> : vector<16xf32>
      %63 = vector.multi_reduction <add>, %62, %cst_33 [1] : vector<16x32xf32> to vector<16xf32>
      %64 = vector.shape_cast %63 : vector<16xf32> to vector<16x1xf32>
      %65 = arith.addf %61, %64 : vector<16x1xf32>
      %cst_34 = arith.constant 6.400000e+01 : f32
      %66 = vector.broadcast %cst_34 : f32 to vector<16x1xf32>
      %67 = arith.divf %65, %66 : vector<16x1xf32>
      %cst_35 = arith.constant 9.99999974E-6 : f32
      %68 = vector.broadcast %cst_35 : f32 to vector<16x1xf32>
      %69 = arith.addf %67, %68 : vector<16x1xf32>
      %70 = math.rsqrt %69 : vector<16x1xf32>
      %71 = vector.broadcast %70 : vector<16x1xf32> to vector<16x32xf32>
      %72 = arith.mulf %56, %71 : vector<16x32xf32>
      %c0_36 = arith.constant 0 : index
      %c0_37 = arith.constant 0 : index
      %73 = vector.load %arg5[%c0_36, %c0_37] : memref<1x32xf32, #tpu.memory_space<vmem>>, vector<1x32xf32>
      %74 = vector.broadcast %73 : vector<1x32xf32> to vector<16x32xf32>
      %75 = arith.mulf %72, %74 : vector<16x32xf32>
      %c0_38 = arith.constant 0 : index
      %c0_39 = arith.constant 0 : index
      %76 = vector.load %arg7[%c0_38, %c0_39] : memref<1x32xf32, #tpu.memory_space<vmem>>, vector<1x32xf32>
      %77 = vector.broadcast %76 : vector<1x32xf32> to vector<16x32xf32>
      %78 = arith.addf %75, %77 : vector<16x32xf32>
      %79 = vector.broadcast %70 : vector<16x1xf32> to vector<16x32xf32>
      %80 = arith.mulf %58, %79 : vector<16x32xf32>
      %c0_40 = arith.constant 0 : index
      %c0_41 = arith.constant 0 : index
      %81 = vector.load %arg6[%c0_40, %c0_41] : memref<1x32xf32, #tpu.memory_space<vmem>>, vector<1x32xf32>
      %82 = vector.broadcast %81 : vector<1x32xf32> to vector<16x32xf32>
      %83 = arith.mulf %80, %82 : vector<16x32xf32>
      %c0_42 = arith.constant 0 : index
      %c0_43 = arith.constant 0 : index
      %84 = vector.load %arg8[%c0_42, %c0_43] : memref<1x32xf32, #tpu.memory_space<vmem>>, vector<1x32xf32>
      %85 = vector.broadcast %84 : vector<1x32xf32> to vector<16x32xf32>
      %86 = arith.addf %83, %85 : vector<16x32xf32>
      %87 = arith.truncf %78 : vector<16x32xf32> to vector<16x32xbf16>
      %c0_44 = arith.constant 0 : index
      %c0_45 = arith.constant 0 : index
      %88 = vector.load %arg13[%c0_44, %c0_45] : memref<16x32xbf16, #tpu.memory_space<vmem>>, vector<16x32xbf16>
      tpu.vector_store %arg13[%c0_44, %c0_45], %87 {strides = array<i32>} : memref<16x32xbf16, #tpu.memory_space<vmem>>, vector<16x32xbf16>,
      %89 = arith.truncf %86 : vector<16x32xf32> to vector<16x32xbf16>
      %c0_46 = arith.constant 0 : index
      %c0_47 = arith.constant 0 : index
      %90 = vector.load %arg14[%c0_46, %c0_47] : memref<16x32xbf16, #tpu.memory_space<vmem>>, vector<16x32xbf16>
      tpu.vector_store %arg14[%c0_46, %c0_47], %89 {strides = array<i32>} : memref<16x32xbf16, #tpu.memory_space<vmem>>, vector<16x32xbf16>,
    } else {
    }
    %c0 = arith.constant 0 : index
    %c0_1 = arith.constant 0 : index
    %3 = vector.load %arg11[%c0, %c0_1] : memref<1x128xf32, #tpu.memory_space<vmem>>, vector<1x128xf32>
    %c0_2 = arith.constant 0 : index
    %c0_3 = arith.constant 0 : index
    %4 = vector.load %arg13[%c0_2, %c0_3] : memref<16x32xbf16, #tpu.memory_space<vmem>>, vector<16x32xbf16>
    %c0_4 = arith.constant 0 : index
    %c0_5 = arith.constant 0 : index
    %5 = vector.load %arg9[%c0_4, %c0_5] : memref<32x128xbf16, #tpu.memory_space<vmem>>, vector<32x128xbf16>
    %cst = arith.constant dense<0.000000e+00> : vector<16x128xf32>
    %6 = tpu.matmul %4, %5, %cst {dimension_numbers = #tpu.dot_dimension_numbers<[1], [0], [0], [1], [0, 0, 1, 1], [], []>} : vector<16x32xbf16>, vector<32x128xbf16>, vector<16x128xf32> -> vector<16x128xf32>
    %c0_6 = arith.constant 0 : index
    %c0_7 = arith.constant 0 : index
    %7 = vector.load %arg14[%c0_6, %c0_7] : memref<16x32xbf16, #tpu.memory_space<vmem>>, vector<16x32xbf16>
    %c0_8 = arith.constant 0 : index
    %c0_9 = arith.constant 0 : index
    %8 = vector.load %arg10[%c0_8, %c0_9] : memref<32x128xbf16, #tpu.memory_space<vmem>>, vector<32x128xbf16>
    %cst_10 = arith.constant dense<0.000000e+00> : vector<16x128xf32>
    %9 = tpu.matmul %7, %8, %cst_10 {dimension_numbers = #tpu.dot_dimension_numbers<[1], [0], [0], [1], [0, 0, 1, 1], [], []>} : vector<16x32xbf16>, vector<32x128xbf16>, vector<16x128xf32> -> vector<16x128xf32>
    %10 = arith.addf %6, %9 : vector<16x128xf32>
    %11 = vector.broadcast %3 : vector<1x128xf32> to vector<16x128xf32>
    %12 = arith.addf %10, %11 : vector<16x128xf32>
    %13 = vector.shape_cast %12 : vector<16x128xf32> to vector<2x8x128xf32>
    %c0_11 = arith.constant 0 : index
    %c0_12 = arith.constant 0 : index
    %c0_13 = arith.constant 0 : index
    %14 = vector.load %arg12[%c0_11, %c0_12, %c0_13] : memref<2x8x128xf32, #tpu.memory_space<vmem>>, vector<2x8x128xf32>
    tpu.vector_store %arg12[%c0_11, %c0_12, %c0_13], %13 {strides = array<i32>} : memref<2x8x128xf32, #tpu.memory_space<vmem>>, vector<2x8x128xf32>,
    return
  }
  func.func @transform_0(%arg0: i32, %arg1: i32) -> (i32, i32, i32) {
    %c0_i32 = arith.constant 0 : i32
    %c0_i32_0 = arith.constant 0 : i32
    %c0_i32_1 = arith.constant 0 : i32
    return %arg0, %c0_i32, %c0_i32_0 : i32, i32, i32
  }
  func.func @transform_1(%arg0: i32, %arg1: i32) -> (i32, i32) {
    %c0_i32 = arith.constant 0 : i32
    %c0_i32_0 = arith.constant 0 : i32
    %c0_i32_1 = arith.constant 0 : i32
    return %c0_i32, %c0_i32_0 : i32, i32
  }
  func.func @transform_2(%arg0: i32, %arg1: i32) -> (i32, i32) {
    %c0_i32 = arith.constant 0 : i32
    %c0_i32_0 = arith.constant 0 : i32
    %c0_i32_1 = arith.constant 0 : i32
    return %c0_i32, %c0_i32_0 : i32, i32
  }
  func.func @transform_3(%arg0: i32, %arg1: i32) -> (i32, i32) {
    %c0_i32 = arith.constant 0 : i32
    %c0_i32_0 = arith.constant 0 : i32
    %c0_i32_1 = arith.constant 0 : i32
    return %c0_i32, %c0_i32_0 : i32, i32
  }
  func.func @transform_4(%arg0: i32, %arg1: i32) -> (i32, i32) {
    %c0_i32 = arith.constant 0 : i32
    %c0_i32_0 = arith.constant 0 : i32
    %c0_i32_1 = arith.constant 0 : i32
    return %c0_i32, %c0_i32_0 : i32, i32
  }
  func.func @transform_5(%arg0: i32, %arg1: i32) -> (i32, i32) {
    %c0_i32 = arith.constant 0 : i32
    %c0_i32_0 = arith.constant 0 : i32
    %c0_i32_1 = arith.constant 0 : i32
    return %c0_i32, %c0_i32_0 : i32, i32
  }
  func.func @transform_6(%arg0: i32, %arg1: i32) -> (i32, i32) {
    %c0_i32 = arith.constant 0 : i32
    %c0_i32_0 = arith.constant 0 : i32
    %c0_i32_1 = arith.constant 0 : i32
    return %c0_i32, %c0_i32_0 : i32, i32
  }
  func.func @transform_7(%arg0: i32, %arg1: i32) -> (i32, i32) {
    %c0_i32 = arith.constant 0 : i32
    %c0_i32_0 = arith.constant 0 : i32
    return %c0_i32, %arg1 : i32, i32
  }
  func.func @transform_8(%arg0: i32, %arg1: i32) -> (i32, i32) {
    %c0_i32 = arith.constant 0 : i32
    %c0_i32_0 = arith.constant 0 : i32
    return %c0_i32, %arg1 : i32, i32
  }
  func.func @transform_9(%arg0: i32, %arg1: i32) -> (i32, i32) {
    %c0_i32 = arith.constant 0 : i32
    %c0_i32_0 = arith.constant 0 : i32
    return %c0_i32, %arg1 : i32, i32
  }
  func.func @transform_10(%arg0: i32, %arg1: i32) -> (i32, i32, i32) {
    %c0_i32 = arith.constant 0 : i32
    %c0_i32_0 = arith.constant 0 : i32
    return %arg0, %c0_i32, %arg1 : i32, i32, i32
  }
}

</mosaic_0001>

<llo_original>
// kernel: quantum_llm_forward.1
$region0: #{quantum_llm_forward.1}
  #allocation0 [shape = 'u32[]', space=smem, size = 0x4, offset = 0x4, fixed_abs, tag = 'smem constant byte address 0x4 - core index']
  #allocation1 [shape = 'u32[144,128]{1,0:T(1,128)}', space=vmem, size = 0x12000, scoped, tag = 'internal scratch']
  #allocation2 [shape = 'bf16[16,32]{1,0:T(16,128)(2,1)}', space=vmem, size = 0x1000, scoped, tag = 'scratch operand']
  #allocation3 [shape = 'bf16[16,32]{1,0:T(16,128)(2,1)}', space=vmem, size = 0x1000, scoped, tag = 'scratch operand']
  %s0 = inlined_call_operand.vmem [shape: f32[2,8,32], index: 0, kind: input, shape index: {}]
  %s1 = inlined_call_operand.vmem [shape: f32[32,32], index: 1, kind: input, shape index: {}]
  %s2 = inlined_call_operand.vmem [shape: f32[1,32], index: 2, kind: input, shape index: {}]
  %s3 = inlined_call_operand.vmem [shape: f32[1,32], index: 3, kind: input, shape index: {}]
  %s4 = inlined_call_operand.vmem [shape: f32[1,32], index: 4, kind: input, shape index: {}]
  %s5 = inlined_call_operand.vmem [shape: f32[1,32], index: 5, kind: input, shape index: {}]
  %s6 = inlined_call_operand.vmem [shape: f32[1,32], index: 6, kind: input, shape index: {}]
  %s7 = inlined_call_operand.vmem [shape: bf16[32,128], index: 7, kind: input, shape index: {}]
  %s8 = inlined_call_operand.vmem [shape: bf16[32,128], index: 8, kind: input, shape index: {}]
  %s9 = inlined_call_operand.vmem [shape: f32[1,128], index: 9, kind: input, shape index: {}]
  %s10 = inlined_call_operand.hbm [shape: f32[2,8,128], index: 10, kind: output, shape index: {}]
  %s11 = sld [smem:[#allocation0]]
  $region54: #{quantum_llm_forward.1} parent=0
    _
  %s13 = ssub.s32 1, %s11
  %s14 = scalar_select 0, %s13, %s11
  $region1: #{quantum_llm_forward.1} parent=0
    #allocation4 [shape = 'u8[8192]{0}', space=vmem, size = 0x2000, scoped, tag = 'output window, operand 0, single buffered']
    #allocation5 [shape = 's32[1]{0}', space=sflag, size = 0x4, scoped, tag = 'scoped memory for quantum_llm_forward.1']
    %15 = vsyncpa [#allocation5], 0
    // Predicated region
    $region2: #{quantum_llm_forward.1} parent=1 // pred_check
      _
    $region3: #{quantum_llm_forward.1} parent=1 // pred_check_branch
      %17 = sbr.rel (0) target = $region5
    $region4: #{quantum_llm_forward.1} parent=1 // pred_region
      _
    $region5: #{quantum_llm_forward.1} parent=1 // pred_fallthru
      _
    // Predicated region
    $region6: #{quantum_llm_forward.1} parent=1 // pred_check
      _
    $region7: #{quantum_llm_forward.1} parent=1 // pred_check_branch
      %19 = sbr.rel (0) target = $region9
    $region8: #{quantum_llm_forward.1} parent=1 // pred_region
      _
    $region9: #{quantum_llm_forward.1} parent=1 // pred_fallthru
      _
    // Predicated region
    $region10: #{quantum_llm_forward.1} parent=1 // pred_check
      _
    $region11: #{quantum_llm_forward.1} parent=1 // pred_check_branch
      %21 = sbr.rel (0) target = $region13
    $region12: #{quantum_llm_forward.1} parent=1 // pred_region
      _
    $region13: #{quantum_llm_forward.1} parent=1 // pred_fallthru
      _
    // Predicated region
    $region14: #{quantum_llm_forward.1} parent=1 // pred_check
      _
    $region15: #{quantum_llm_forward.1} parent=1 // pred_check_branch
      %23 = sbr.rel (0) target = $region17
    $region16: #{quantum_llm_forward.1} parent=1 // pred_region
      _
    $region17: #{quantum_llm_forward.1} parent=1 // pred_fallthru
      _
    // Predicated region
    $region18: #{quantum_llm_forward.1} parent=1 // pred_check
      _
    $region19: #{quantum_llm_forward.1} parent=1 // pred_check_branch
      %25 = sbr.rel (0) target = $region21
    $region20: #{quantum_llm_forward.1} parent=1 // pred_region
      _
    $region21: #{quantum_llm_forward.1} parent=1 // pred_fallthru
      _
    // Predicated region
    $region22: #{quantum_llm_forward.1} parent=1 // pred_check
      _
    $region23: #{quantum_llm_forward.1} parent=1 // pred_check_branch
      %27 = sbr.rel (0) target = $region25
    $region24: #{quantum_llm_forward.1} parent=1 // pred_region
      _
    $region25: #{quantum_llm_forward.1} parent=1 // pred_fallthru
      _
    // Predicated region
    $region26: #{quantum_llm_forward.1} parent=1 // pred_check
      _
    $region27: #{quantum_llm_forward.1} parent=1 // pred_check_branch
      %29 = sbr.rel (0) target = $region29
    $region28: #{quantum_llm_forward.1} parent=1 // pred_region
      _
    $region29: #{quantum_llm_forward.1} parent=1 // pred_fallthru
      _
    // Predicated region
    $region30: #{quantum_llm_forward.1} parent=1 // pred_check
      _
    $region31: #{quantum_llm_forward.1} parent=1 // pred_check_branch
      %31 = sbr.rel (0) target = $region33
    $region32: #{quantum_llm_forward.1} parent=1 // pred_region
      _
    $region33: #{quantum_llm_forward.1} parent=1 // pred_fallthru
      _
    // Predicated region
    $region34: #{quantum_llm_forward.1} parent=1 // pred_check
      _
    $region35: #{quantum_llm_forward.1} parent=1 // pred_check_branch
      %33 = sbr.rel (0) target = $region37
    $region36: #{quantum_llm_forward.1} parent=1 // pred_region
      _
    $region37: #{quantum_llm_forward.1} parent=1 // pred_fallthru
      _
    // Predicated region
    $region38: #{quantum_llm_forward.1} parent=1 // pred_check
      _
    $region39: #{quantum_llm_forward.1} parent=1 // pred_check_branch
      %35 = sbr.rel (0) target = $region41
    $region40: #{quantum_llm_forward.1} parent=1 // pred_region
      _
    $region41: #{quantum_llm_forward.1} parent=1 // pred_fallthru
      _
    %p37 = scmp.eq.s32.totalorder 0, 0
    // Predicated region
    $region42: #{quantum_llm_forward.1} parent=1 // pred_check
      %p38 = pneg %p37
    $region43: #{quantum_llm_forward.1} parent=1 // pred_check_branch
      %40 = sbr.rel (%p38) target = $region45
    $region44: #{quantum_llm_forward.1} parent=1 // pred_region
      %v41 = vld [vmem:[%s0] sm:$0xff]
      %v42 = vld [vmem:[%s0 + $0x8] sm:$0xff]
      %v43 = vld [vmem:[%s2] sm:$0x1]
      %v44 = vld [vmem:[%s1] sm:$0xff]
      %v45 = vld [vmem:[%s1 + $0x8] sm:$0xff]
      %v46 = vld [vmem:[%s1 + $0x10] sm:$0xff]
      %v47 = vld [vmem:[%s1 + $0x18] sm:$0xff]
      %v49 = vlaneseq
      %v50 = vshrl.u32 %v49, 7
      %v51 = vsub.s32 0, %v50
      %v52 = vrot.slane %v43, %v51
      %vm54 = vcmask 261120
      %v56 = vsel %vm54, %v41, 0
      %v59 = vsel %vm54, %v42, 0
      %61 = vmatprep.subr.mxu0 0.0
      %62 = vmatpush1.msra.mxu0 %v44
      %63 = vmatprep.subr.mxu0 0.0
      %64 = vmatpush1.msra.mxu0 %v45
      %65 = vmatprep.subr.mxu0 0.0
      %66 = vmatpush1.msra.mxu0 %v46
      %67 = vmatprep.subr.mxu0 0.0
      %68 = vmatpush1.msra.mxu0 %v47
      %69 = vmatprep.subr.mxu0 0.0
      %70 = vmatpush1.msra.mxu0 0.0
      %71 = vmatprep.subr.mxu0 0.0
      %72 = vmatpush1.msra.mxu0 0.0
      %73 = vmatprep.subr.mxu0 0.0
      %74 = vmatpush1.msra.mxu0 0.0
      %75 = vmatprep.subr.mxu0 0.0
      %76 = vmatpush1.msra.mxu0 0.0
      %77 = vmatprep.subr.mxu0 0.0
      %78 = vmatpush1.msra.mxu0 0.0
      %79 = vmatprep.subr.mxu0 0.0
      %80 = vmatpush1.msra.mxu0 0.0
      %81 = vmatprep.subr.mxu0 0.0
      %82 = vmatpush1.msra.mxu0 0.0
      %83 = vmatprep.subr.mxu0 0.0
      %84 = vmatpush1.msra.mxu0 0.0
      %85 = vmatprep.subr.mxu0 0.0
      %86 = vmatpush1.msra.mxu0 0.0
      %87 = vmatprep.subr.mxu0 0.0
      %88 = vmatpush1.msra.mxu0 0.0
      %89 = vmatprep.subr.mxu0 0.0
      %90 = vmatpush1.msra.mxu0 0.0
      %91 = vmatprep.subr.mxu0 0.0
      %92 = vmatpush1.msra.mxu0 0.0
      %93 = vmatprep.subr.mxu0 0.0
      %94 = vmatpush1.msra.mxu0 0.0
      %95 = vmatprep.subr.mxu0 0.0
      %96 = vmatpush1.msra.mxu0 0.0
      %97 = vmatprep.subr.mxu0 0.0
      %98 = vmatpush1.msra.mxu0 0.0
      %99 = vmatprep.subr.mxu0 0.0
      %100 = vmatpush1.msra.mxu0 0.0
      %101 = vmatprep.subr.mxu0 0.0
      %102 = vmatpush1.msra.mxu0 0.0
      %103 = vmatprep.subr.mxu0 0.0
      %104 = vmatpush1.msra.mxu0 0.0
      %105 = vmatprep.subr.mxu0 0.0
      %106 = vmatpush1.msra.mxu0 0.0
      %107 = vmatprep.subr.mxu0 0.0
      %108 = vmatpush1.msra.mxu0 0.0
      %109 = vmatprep.subr.mxu0 0.0
      %110 = vmatpush1.msra.mxu0 0.0
      %111 = vmatprep.subr.mxu0 0.0
      %112 = vmatpush1.msra.mxu0 0.0
      %113 = vmatprep.subr.mxu0 0.0
      %114 = vmatpush1.msra.mxu0 0.0
      %115 = vmatprep.subr.mxu0 0.0
      %116 = vmatpush1.msra.mxu0 0.0
      %117 = vmatprep.subr.mxu0 0.0
      %118 = vmatpush1.msra.mxu0 0.0
      %119 = vmatprep.subr.mxu0 0.0
      %120 = vmatpush1.msra.mxu0 0.0
      %121 = vmatprep.subr.mxu0 0.0
      %122 = vmatpush1.msra.mxu0 0.0
      %123 = vmatprep.subr.mxu0 0.0
      %124 = vmatpush1.msra.mxu0 0.0
      %125 = vmatprep.mubr.f32.mxu0 0.0
      %126 = vmatmul.mubr.f32.gmra.mrb[0].mxu0 %v56
      %v127 = vpop.f32.mrb[0].mxu0
      %v128 = vadd.f32 %v52, %v127
      %v129 = vpop.f32.mrb[0].mxu0
      %130 = vmatprep.mubr.f32.mxu0 0.0
      %131 = vmatmul.mubr.f32.gmra.mrb[0].mxu0 %v59
      %v132 = vpop.f32.mrb[0].mxu0
      %v133 = vadd.f32 %v52, %v132
      %v134 = vpop.f32.mrb[0].mxu0
      %135 = vdwg.mxu0
      %v136 = vtanh.pop %v128
      %v137 = vtanh.pop %v133
      %v138 = vand.u32 2147483647, %v136
      %vm139 = vcmp.le.f32.partialorder %v138, 0.7853982
      %vm140 = vcmp.lt.s32.totalorder %v136, 0
      %v141 = vand.u32 %v136, 2139095040
      %v142 = vshrl.u32 %v141, 23
      %v143 = vsub.s32 %v142, 127
      %v144 = vand.u32 2147483647, %v136
      %v145 = vand.u32 %v144, 8388607
      %v146 = vor.u32 %v145, 8388608
      %v147 = vsub.s32 0, %v146
      %v148 = vadd.s32 %v143, 1
      %vm149 = vcmp.gt.s32.totalorder %v148, 0
      %v150 = vsel %vm149, %v148, 0
      %v151 = vshrl.u32 %v150, 5
      %v152 = vand.u32 %v150, 31
      %v153 = vsub.s32 32, %v152
      %v154 = vshrl.u32 683565275, %v153
      %v155 = vshll.u32 683565275, %v152
      %v156 = vshrl.u32 2475754826, %v153
      %v157 = vor.u32 %v155, %v156
      %v158 = vshll.u32 2475754826, %v152
      %v159 = vshrl.u32 2131351028, %v153
      %v160 = vor.u32 %v158, %v159
      %v161 = vshll.u32 2131351028, %v152
      %v162 = vshrl.u32 2102212464, %v153
      %v163 = vor.u32 %v161, %v162
      %v164 = vshll.u32 2102212464, %v152
      %v165 = vshrl.u32 920167782, %v153
      %v166 = vor.u32 %v164, %v165
      %v167 = vshll.u32 920167782, %v152
      %v168 = vshrl.u32 1326507024, %v153
      %v169 = vor.u32 %v167, %v168
      %vm170 = vcmp.lt.s32.totalorder %v151, 1
      %vm171 = vcmp.lt.s32.totalorder %v151, 2
      %vm172 = vcmp.lt.s32.totalorder %v151, 3
      %vm173 = vcmp.lt.s32.totalorder %v151, 4
      %v174 = vsel %vm170, %v154, %v157
      %v175 = vsel %vm173, %v163, 2102212464
      %v176 = vsel %vm172, %v160, %v175
      %v177 = vsel %vm171, %v174, %v176
      %v178 = vsel %vm170, %v157, %v160
      %v179 = vsel %vm173, %v166, 920167782
      %v180 = vsel %vm172, %v163, %v179
      %v181 = vsel %vm171, %v178, %v180
      %v182 = vsel %vm170, %v160, %v163
      %v183 = vsel %vm173, %v169, 1326507024
      %v184 = vsel %vm172, %v166, %v183
      %v185 = vsel %vm171, %v182, %v184
      %v186 = vshll.u32 %v146, 8
      %v187 = vmul.u32.u64.compose %v186, %v185
      %v188 = vextract.low.u32 %v187
      %v189 = vextract.high.u32 %v187
      %v190 = vmul.u32.u64.compose %v186, %v181
      %v191 = vextract.low.u32 %v190
      %v192 = vextract.high.u32 %v190
      %v193 = vmul.u32 %v186, %v177
      %v194 = vadd.s32 %v189, %v191
      %vm195 = vc.u32 %v189, %v191
      %v196 = vadd.s32 %v192, 1
      %v197 = vsel %vm195, %v196, %v192
      %v198 = vadd.s32 %v193, %v197
      %v199 = vadd.s32 %v198, 536870912
      %v200 = vshrl.u32 %v199, 30
      %v201 = vshll.u32 %v200, 30
      %v202 = vsub.s32 %v198, %v201
      %vm203 = vcmp.lt.s32.totalorder %v202, 0
      %v204 = vsub.s32 0, %v202
      %v205 = vsel %vm203, %v204, %v202
      %v206 = vclz %v205
      %v207 = vsub.s32 %v206, 2
      %vm208 = vcmp.gt.s32.totalorder 0, %v207
      %v209 = vsel %vm208, 0, %v207
      %v210 = vsub.s32 32, %v209
      %v211 = vshll.u32 %v202, %v209
      %v212 = vshrl.u32 %v194, %v210
      %v213 = vor.u32 %v211, %v212
      %v214 = vsub.s32 4294967266, %v209
      %v215 = vadd.s32 %v214, 127
      %v216 = vshll.u32 %v215, 23
      %v217 = vor.u32 4788187, %v216
      %v218 = vand.u32 2147483647, %v217
      %v220 = vcvt.s32.f32 %v213
      %v221 = vmul.f32 %v220, %v218
      %v222 = vxor.u32 %v221, 2147483648
      %v223 = vsel %vm140, %v222, %v221
      %v224 = vsub.s32 4, %v200
      %v225 = vsel %vm140, %v224, %v200
      %v226 = vsel %vm139, %v136, %v223
      %v227 = vsel %vm139, 0, %v225
      %v228 = vcosq.f32.pop %v226
      %v229 = vsinq.f32.pop %v226
      %vm230 = vweird.f32 %v136
      %v231 = vand.u32 %v227, 3
      %vm232 = vcmp.lt.s32.totalorder %v231, 2
      %vm233 = vcmp.eq.s32.totalorder %v231, 0
      %v234 = vxor.u32 %v229, 2147483648
      %v235 = vsel %vm233, %v228, %v234
      %vm236 = vcmp.eq.s32.totalorder %v231, 2
      %v237 = vxor.u32 %v228, 2147483648
      %v238 = vsel %vm236, %v237, %v229
      %v239 = vsel %vm232, %v235, %v238
      %v240 = vsel %vm230, nan, %v239
      %v241 = vand.u32 2147483647, %v137
      %vm242 = vcmp.le.f32.partialorder %v241, 0.7853982
      %vm243 = vcmp.lt.s32.totalorder %v137, 0
      %v244 = vand.u32 %v137, 2139095040
      %v245 = vshrl.u32 %v244, 23
      %v246 = vsub.s32 %v245, 127
      %v247 = vand.u32 2147483647, %v137
      %v248 = vand.u32 %v247, 8388607
      %v249 = vor.u32 %v248, 8388608
      %v250 = vsub.s32 0, %v249
      %v251 = vadd.s32 %v246, 1
      %vm252 = vcmp.gt.s32.totalorder %v251, 0
      %v253 = vsel %vm252, %v251, 0
      %v254 = vshrl.u32 %v253, 5
      %v255 = vand.u32 %v253, 31
      %v256 = vsub.s32 32, %v255
      %v257 = vshrl.u32 683565275, %v256
      %v258 = vshll.u32 683565275, %v255
      %v259 = vshrl.u32 2475754826, %v256
      %v260 = vor.u32 %v258, %v259
      %v261 = vshll.u32 2475754826, %v255
      %v262 = vshrl.u32 2131351028, %v256
      %v263 = vor.u32 %v261, %v262
      %v264 = vshll.u32 2131351028, %v255
      %v265 = vshrl.u32 2102212464, %v256
      %v266 = vor.u32 %v264, %v265
      %v267 = vshll.u32 2102212464, %v255
      %v268 = vshrl.u32 920167782, %v256
      %v269 = vor.u32 %v267, %v268
      %v270 = vshll.u32 920167782, %v255
      %v271 = vshrl.u32 1326507024, %v256
      %v272 = vor.u32 %v270, %v271
      %vm273 = vcmp.lt.s32.totalorder %v254, 1
      %vm274 = vcmp.lt.s32.totalorder %v254, 2
      %vm275 = vcmp.lt.s32.totalorder %v254, 3
      %vm276 = vcmp.lt.s32.totalorder %v254, 4
      %v277 = vsel %vm273, %v257, %v260
      %v278 = vsel %vm276, %v266, 2102212464
      %v279 = vsel %vm275, %v263, %v278
      %v280 = vsel %vm274, %v277, %v279
      %v281 = vsel %vm273, %v260, %v263
      %v282 = vsel %vm276, %v269, 920167782
      %v283 = vsel %vm275, %v266, %v282
      %v284 = vsel %vm274, %v281, %v283
      %v285 = vsel %vm273, %v263, %v266
      %v286 = vsel %vm276, %v272, 1326507024
      %v287 = vsel %vm275, %v269, %v286
      %v288 = vsel %vm274, %v285, %v287
      %v289 = vshll.u32 %v249, 8
      %v290 = vmul.u32.u64.compose %v289, %v288
      %v291 = vextract.low.u32 %v290
      %v292 = vextract.high.u32 %v290
      %v293 = vmul.u32.u64.compose %v289, %v284
      %v294 = vextract.low.u32 %v293
      %v295 = vextract.high.u32 %v293
      %v296 = vmul.u32 %v289, %v280
      %v297 = vadd.s32 %v292, %v294
      %vm298 = vc.u32 %v292, %v294
      %v299 = vadd.s32 %v295, 1
      %v300 = vsel %vm298, %v299, %v295
      %v301 = vadd.s32 %v296, %v300
      %v302 = vadd.s32 %v301, 536870912
      %v303 = vshrl.u32 %v302, 30
      %v304 = vshll.u32 %v303, 30
      %v305 = vsub.s32 %v301, %v304
      %vm306 = vcmp.lt.s32.totalorder %v305, 0
      %v307 = vsub.s32 0, %v305
      %v308 = vsel %vm306, %v307, %v305
      %v309 = vclz %v308
      %v310 = vsub.s32 %v309, 2
      %vm311 = vcmp.gt.s32.totalorder 0, %v310
      %v312 = vsel %vm311, 0, %v310
      %v313 = vsub.s32 32, %v312
      %v314 = vshll.u32 %v305, %v312
      %v315 = vshrl.u32 %v297, %v313
      %v316 = vor.u32 %v314, %v315
      %v317 = vsub.s32 4294967266, %v312
      %v318 = vadd.s32 %v317, 127
      %v319 = vshll.u32 %v318, 23
      %v320 = vor.u32 4788187, %v319
      %v321 = vand.u32 2147483647, %v320
      %v323 = vcvt.s32.f32 %v316
      %v324 = vmul.f32 %v323, %v321
      %v325 = vxor.u32 %v324, 2147483648
      %v326 = vsel %vm243, %v325, %v324
      %v327 = vsub.s32 4, %v303
      %v328 = vsel %vm243, %v327, %v303
      %v329 = vsel %vm242, %v137, %v326
      %v330 = vsel %vm242, 0, %v328
      %v331 = vcosq.f32.pop %v329
      %v332 = vsinq.f32.pop %v329
      %vm333 = vweird.f32 %v137
      %v334 = vand.u32 %v330, 3
      %vm335 = vcmp.lt.s32.totalorder %v334, 2
      %vm336 = vcmp.eq.s32.totalorder %v334, 0
      %v337 = vxor.u32 %v332, 2147483648
      %v338 = vsel %vm336, %v331, %v337
      %vm339 = vcmp.eq.s32.totalorder %v334, 2
      %v340 = vxor.u32 %v331, 2147483648
      %v341 = vsel %vm339, %v340, %v332
      %v342 = vsel %vm335, %v338, %v341
      %v343 = vsel %vm333, nan, %v342
      %v344 = vmul.f32 %v41, %v240
      %v345 = vmul.f32 %v42, %v343
      %v346 = vand.u32 2147483647, %v136
      %vm347 = vcmp.le.f32.partialorder %v346, 0.7853982
      %vm348 = vcmp.lt.s32.totalorder %v136, 0
      %v349 = vand.u32 %v136, 2139095040
      %v350 = vshrl.u32 %v349, 23
      %v351 = vsub.s32 %v350, 127
      %v352 = vand.u32 2147483647, %v136
      %v353 = vand.u32 %v352, 8388607
      %v354 = vor.u32 %v353, 8388608
      %v355 = vsub.s32 0, %v354
      %v356 = vadd.s32 %v351, 1
      %vm357 = vcmp.gt.s32.totalorder %v356, 0
      %v358 = vsel %vm357, %v356, 0
      %v359 = vshrl.u32 %v358, 5
      %v360 = vand.u32 %v358, 31
      %v361 = vsub.s32 32, %v360
      %v362 = vshrl.u32 683565275, %v361
      %v363 = vshll.u32 683565275, %v360
      %v364 = vshrl.u32 2475754826, %v361
      %v365 = vor.u32 %v363, %v364
      %v366 = vshll.u32 2475754826, %v360
      %v367 = vshrl.u32 2131351028, %v361
      %v368 = vor.u32 %v366, %v367
      %v369 = vshll.u32 2131351028, %v360
      %v370 = vshrl.u32 2102212464, %v361
      %v371 = vor.u32 %v369, %v370
      %v372 = vshll.u32 2102212464, %v360
      %v373 = vshrl.u32 920167782, %v361
      %v374 = vor.u32 %v372, %v373
      %v375 = vshll.u32 920167782, %v360
      %v376 = vshrl.u32 1326507024, %v361
      %v377 = vor.u32 %v375, %v376
      %vm378 = vcmp.lt.s32.totalorder %v359, 1
      %vm379 = vcmp.lt.s32.totalorder %v359, 2
      %vm380 = vcmp.lt.s32.totalorder %v359, 3
      %vm381 = vcmp.lt.s32.totalorder %v359, 4
      %v382 = vsel %vm378, %v362, %v365
      %v383 = vsel %vm381, %v371, 2102212464
      %v384 = vsel %vm380, %v368, %v383
      %v385 = vsel %vm379, %v382, %v384
      %v386 = vsel %vm378, %v365, %v368
      %v387 = vsel %vm381, %v374, 920167782
      %v388 = vsel %vm380, %v371, %v387
      %v389 = vsel %vm379, %v386, %v388
      %v390 = vsel %vm378, %v368, %v371
      %v391 = vsel %vm381, %v377, 1326507024
      %v392 = vsel %vm380, %v374, %v391
      %v393 = vsel %vm379, %v390, %v392
      %v394 = vshll.u32 %v354, 8
      %v395 = vmul.u32.u64.compose %v394, %v393
      %v396 = vextract.low.u32 %v395
      %v397 = vextract.high.u32 %v395
      %v398 = vmul.u32.u64.compose %v394, %v389
      %v399 = vextract.low.u32 %v398
      %v400 = vextract.high.u32 %v398
      %v401 = vmul.u32 %v394, %v385
      %v402 = vadd.s32 %v397, %v399
      %vm403 = vc.u32 %v397, %v399
      %v404 = vadd.s32 %v400, 1
      %v405 = vsel %vm403, %v404, %v400
      %v406 = vadd.s32 %v401, %v405
      %v407 = vadd.s32 %v406, 536870912
      %v408 = vshrl.u32 %v407, 30
      %v409 = vshll.u32 %v408, 30
      %v410 = vsub.s32 %v406, %v409
      %vm411 = vcmp.lt.s32.totalorder %v410, 0
      %v412 = vsub.s32 0, %v410
      %v413 = vsel %vm411, %v412, %v410
      %v414 = vclz %v413
      %v415 = vsub.s32 %v414, 2
      %vm416 = vcmp.gt.s32.totalorder 0, %v415
      %v417 = vsel %vm416, 0, %v415
      %v418 = vsub.s32 32, %v417
      %v419 = vshll.u32 %v410, %v417
      %v420 = vshrl.u32 %v402, %v418
      %v421 = vor.u32 %v419, %v420
      %v422 = vsub.s32 4294967266, %v417
      %v423 = vadd.s32 %v422, 127
      %v424 = vshll.u32 %v423, 23
      %v425 = vor.u32 4788187, %v424
      %v426 = vand.u32 2147483647, %v425
      %v428 = vcvt.s32.f32 %v421
      %v429 = vmul.f32 %v428, %v426
      %v430 = vxor.u32 %v429, 2147483648
      %v431 = vsel %vm348, %v430, %v429
      %v432 = vsub.s32 4, %v408
      %v433 = vsel %vm348, %v432, %v408
      %v434 = vsel %vm347, %v136, %v431
      %v435 = vsel %vm347, 0, %v433
      %v436 = vcosq.f32.pop %v434
      %v437 = vsinq.f32.pop %v434
      %vm438 = vweird.f32 %v136
      %v439 = vadd.s32 %v435, 3
      %v440 = vand.u32 %v439, 3
      %vm441 = vcmp.lt.s32.totalorder %v440, 2
      %vm442 = vcmp.eq.s32.totalorder %v440, 0
      %v443 = vxor.u32 %v437, 2147483648
      %v444 = vsel %vm442, %v436, %v443
      %vm445 = vcmp.eq.s32.totalorder %v440, 2
      %v446 = vxor.u32 %v436, 2147483648
      %v447 = vsel %vm445, %v446, %v437
      %v448 = vsel %vm441, %v444, %v447
      %v449 = vsel %vm438, nan, %v448
      %v450 = vand.u32 2147483647, %v137
      %vm451 = vcmp.le.f32.partialorder %v450, 0.7853982
      %vm452 = vcmp.lt.s32.totalorder %v137, 0
      %v453 = vand.u32 %v137, 2139095040
      %v454 = vshrl.u32 %v453, 23
      %v455 = vsub.s32 %v454, 127
      %v456 = vand.u32 2147483647, %v137
      %v457 = vand.u32 %v456, 8388607
      %v458 = vor.u32 %v457, 8388608
      %v459 = vsub.s32 0, %v458
      %v460 = vadd.s32 %v455, 1
      %vm461 = vcmp.gt.s32.totalorder %v460, 0
      %v462 = vsel %vm461, %v460, 0
      %v463 = vshrl.u32 %v462, 5
      %v464 = vand.u32 %v462, 31
      %v465 = vsub.s32 32, %v464
      %v466 = vshrl.u32 683565275, %v465
      %v467 = vshll.u32 683565275, %v464
      %v468 = vshrl.u32 2475754826, %v465
      %v469 = vor.u32 %v467, %v468
      %v470 = vshll.u32 2475754826, %v464
      %v471 = vshrl.u32 2131351028, %v465
      %v472 = vor.u32 %v470, %v471
      %v473 = vshll.u32 2131351028, %v464
      %v474 = vshrl.u32 2102212464, %v465
      %v475 = vor.u32 %v473, %v474
      %v476 = vshll.u32 2102212464, %v464
      %v477 = vshrl.u32 920167782, %v465
      %v478 = vor.u32 %v476, %v477
      %v479 = vshll.u32 920167782, %v464
      %v480 = vshrl.u32 1326507024, %v465
      %v481 = vor.u32 %v479, %v480
      %vm482 = vcmp.lt.s32.totalorder %v463, 1
      %vm483 = vcmp.lt.s32.totalorder %v463, 2
      %vm484 = vcmp.lt.s32.totalorder %v463, 3
      %vm485 = vcmp.lt.s32.totalorder %v463, 4
      %v486 = vsel %vm482, %v466, %v469
      %v487 = vsel %vm485, %v475, 2102212464
      %v488 = vsel %vm484, %v472, %v487
      %v489 = vsel %vm483, %v486, %v488
      %v490 = vsel %vm482, %v469, %v472
      %v491 = vsel %vm485, %v478, 920167782
      %v492 = vsel %vm484, %v475, %v491
      %v493 = vsel %vm483, %v490, %v492
      %v494 = vsel %vm482, %v472, %v475
      %v495 = vsel %vm485, %v481, 1326507024
      %v496 = vsel %vm484, %v478, %v495
      %v497 = vsel %vm483, %v494, %v496
      %v498 = vshll.u32 %v458, 8
      %v499 = vmul.u32.u64.compose %v498, %v497
      %v500 = vextract.low.u32 %v499
      %v501 = vextract.high.u32 %v499
      %v502 = vmul.u32.u64.compose %v498, %v493
      %v503 = vextract.low.u32 %v502
      %v504 = vextract.high.u32 %v502
      %v505 = vmul.u32 %v498, %v489
      %v506 = vadd.s32 %v501, %v503
      %vm507 = vc.u32 %v501, %v503
      %v508 = vadd.s32 %v504, 1
      %v509 = vsel %vm507, %v508, %v504
      %v510 = vadd.s32 %v505, %v509
      %v511 = vadd.s32 %v510, 536870912
      %v512 = vshrl.u32 %v511, 30
      %v513 = vshll.u32 %v512, 30
      %v514 = vsub.s32 %v510, %v513
      %vm515 = vcmp.lt.s32.totalorder %v514, 0
      %v516 = vsub.s32 0, %v514
      %v517 = vsel %vm515, %v516, %v514
      %v518 = vclz %v517
      %v519 = vsub.s32 %v518, 2
      %vm520 = vcmp.gt.s32.totalorder 0, %v519
      %v521 = vsel %vm520, 0, %v519
      %v522 = vsub.s32 32, %v521
      %v523 = vshll.u32 %v514, %v521
      %v524 = vshrl.u32 %v506, %v522
      %v525 = vor.u32 %v523, %v524
      %v526 = vsub.s32 4294967266, %v521
      %v527 = vadd.s32 %v526, 127
      %v528 = vshll.u32 %v527, 23
      %v529 = vor.u32 4788187, %v528
      %v530 = vand.u32 2147483647, %v529
      %v532 = vcvt.s32.f32 %v525
      %v533 = vmul.f32 %v532, %v530
      %v534 = vxor.u32 %v533, 2147483648
      %v535 = vsel %vm452, %v534, %v533
      %v536 = vsub.s32 4, %v512
      %v537 = vsel %vm452, %v536, %v512
      %v538 = vsel %vm451, %v137, %v535
      %v539 = vsel %vm451, 0, %v537
      %v540 = vcosq.f32.pop %v538
      %v541 = vsinq.f32.pop %v538
      %vm542 = vweird.f32 %v137
      %v543 = vadd.s32 %v539, 3
      %v544 = vand.u32 %v543, 3
      %vm545 = vcmp.lt.s32.totalorder %v544, 2
      %vm546 = vcmp.eq.s32.totalorder %v544, 0
      %v547 = vxor.u32 %v541, 2147483648
      %v548 = vsel %vm546, %v540, %v547
      %vm549 = vcmp.eq.s32.totalorder %v544, 2
      %v550 = vxor.u32 %v540, 2147483648
      %v551 = vsel %vm549, %v550, %v541
      %v552 = vsel %vm545, %v548, %v551
      %v553 = vsel %vm542, nan, %v552
      %v554 = vmul.f32 %v41, %v449
      %v555 = vmul.f32 %v42, %v553
      %v557 = vsel %vm54, %v554, 0
      %559 = vmatprep.subr.mxu0 0.0
      %560 = vmatpush1.xpose.msra.mxu0 %v557
      %561 = vmatprep.subr.mxu0 0.0
      %562 = vmatpush1.xpose.msra.mxu0 0.0
      %563 = vmatprep.subr.mxu0 0.0
      %564 = vmatpush1.xpose.msra.mxu0 0.0
      %565 = vmatprep.subr.mxu0 0.0
      %566 = vmatpush1.xpose.msra.mxu0 0.0
      %567 = vmatprep.subr.mxu0 0.0
      %568 = vmatpush1.xpose.msra.mxu0 0.0
      %569 = vmatprep.subr.mxu0 0.0
      %570 = vmatpush1.xpose.msra.mxu0 0.0
      %571 = vmatprep.subr.mxu0 0.0
      %572 = vmatpush1.xpose.msra.mxu0 0.0
      %573 = vmatprep.subr.mxu0 0.0
      %574 = vmatpush1.xpose.msra.mxu0 0.0
      %575 = vmatprep.subr.mxu0 0.0
      %576 = vmatpush1.xpose.msra.mxu0 0.0
      %577 = vmatprep.subr.mxu0 0.0
      %578 = vmatpush1.xpose.msra.mxu0 0.0
      %579 = vmatprep.subr.mxu0 0.0
      %580 = vmatpush1.xpose.msra.mxu0 0.0
      %581 = vmatprep.subr.mxu0 0.0
      %582 = vmatpush1.xpose.msra.mxu0 0.0
      %583 = vmatprep.subr.mxu0 0.0
      %584 = vmatpush1.xpose.msra.mxu0 0.0
      %585 = vmatprep.subr.mxu0 0.0
      %586 = vmatpush1.xpose.msra.mxu0 0.0
      %587 = vmatprep.subr.mxu0 0.0
      %588 = vmatpush1.xpose.msra.mxu0 0.0
      %589 = vmatprep.subr.mxu0 0.0
      %590 = vmatpush1.xpose.msra.mxu0 0.0
      %591 = vmatprep.subr.mxu0 0.0
      %592 = vmatpush1.xpose.msra.mxu0 0.0
      %593 = vmatprep.subr.mxu0 0.0
      %594 = vmatpush1.xpose.msra.mxu0 0.0
      %595 = vmatprep.subr.mxu0 0.0
      %596 = vmatpush1.xpose.msra.mxu0 0.0
      %597 = vmatprep.subr.mxu0 0.0
      %598 = vmatpush1.xpose.msra.mxu0 0.0
      %599 = vmatprep.subr.mxu0 0.0
      %600 = vmatpush1.xpose.msra.mxu0 0.0
      %601 = vmatprep.subr.mxu0 0.0
      %602 = vmatpush1.xpose.msra.mxu0 0.0
      %603 = vmatprep.subr.mxu0 0.0
      %604 = vmatpush1.xpose.msra.mxu0 0.0
      %605 = vmatprep.subr.mxu0 0.0
      %606 = vmatpush1.xpose.msra.mxu0 0.0
      %607 = vmatprep.subr.mxu0 0.0
      %608 = vmatpush1.xpose.msra.mxu0 0.0
      %609 = vmatprep.subr.mxu0 0.0
      %610 = vmatpush1.xpose.msra.mxu0 0.0
      %611 = vmatprep.subr.mxu0 0.0
      %612 = vmatpush1.xpose.msra.mxu0 0.0
      %613 = vmatprep.subr.mxu0 0.0
      %614 = vmatpush1.xpose.msra.mxu0 0.0
      %615 = vmatprep.subr.mxu0 0.0
      %616 = vmatpush1.xpose.msra.mxu0 0.0
      %617 = vmatprep.subr.mxu0 0.0
      %618 = vmatpush1.xpose.msra.mxu0 0.0
      %619 = vmatprep.subr.mxu0 0.0
      %620 = vmatpush1.xpose.msra.mxu0 0.0
      %621 = vmatprep.subr.mxu0 0.0
      %622 = vmatpush1.xpose.msra.mxu0 0.0
      %623 = vmatprep.mubr.f32.mxu0 0.0
      %624 = vmatmul.mubr.f32.gmra.mrb[0].mxu0 %v557
      %v625 = vpop.f32.mrb[0].mxu0
      %v626 = vadd.f32 0.0, %v625
      %v627 = vpop.f32.mrb[0].mxu0
      %628 = vdwg.mxu0
      %v630 = vsel %vm54, %v555, 0
      %632 = vmatprep.subr.mxu0 0.0
      %633 = vmatpush1.xpose.msra.mxu0 %v630
      %634 = vmatprep.subr.mxu0 0.0
      %635 = vmatpush1.xpose.msra.mxu0 0.0
      %636 = vmatprep.subr.mxu0 0.0
      %637 = vmatpush1.xpose.msra.mxu0 0.0
      %638 = vmatprep.subr.mxu0 0.0
      %639 = vmatpush1.xpose.msra.mxu0 0.0
      %640 = vmatprep.subr.mxu0 0.0
      %641 = vmatpush1.xpose.msra.mxu0 0.0
      %642 = vmatprep.subr.mxu0 0.0
      %643 = vmatpush1.xpose.msra.mxu0 0.0
      %644 = vmatprep.subr.mxu0 0.0
      %645 = vmatpush1.xpose.msra.mxu0 0.0
      %646 = vmatprep.subr.mxu0 0.0
      %647 = vmatpush1.xpose.msra.mxu0 0.0
      %648 = vmatprep.subr.mxu0 0.0
      %649 = vmatpush1.xpose.msra.mxu0 0.0
      %650 = vmatprep.subr.mxu0 0.0
      %651 = vmatpush1.xpose.msra.mxu0 0.0
      %652 = vmatprep.subr.mxu0 0.0
      %653 = vmatpush1.xpose.msra.mxu0 0.0
      %654 = vmatprep.subr.mxu0 0.0
      %655 = vmatpush1.xpose.msra.mxu0 0.0
      %656 = vmatprep.subr.mxu0 0.0
      %657 = vmatpush1.xpose.msra.mxu0 0.0
      %658 = vmatprep.subr.mxu0 0.0
      %659 = vmatpush1.xpose.msra.mxu0 0.0
      %660 = vmatprep.subr.mxu0 0.0
      %661 = vmatpush1.xpose.msra.mxu0 0.0
      %662 = vmatprep.subr.mxu0 0.0
      %663 = vmatpush1.xpose.msra.mxu0 0.0
      %664 = vmatprep.subr.mxu0 0.0
      %665 = vmatpush1.xpose.msra.mxu0 0.0
      %666 = vmatprep.subr.mxu0 0.0
      %667 = vmatpush1.xpose.msra.mxu0 0.0
      %668 = vmatprep.subr.mxu0 0.0
      %669 = vmatpush1.xpose.msra.mxu0 0.0
      %670 = vmatprep.subr.mxu0 0.0
      %671 = vmatpush1.xpose.msra.mxu0 0.0
      %672 = vmatprep.subr.mxu0 0.0
      %673 = vmatpush1.xpose.msra.mxu0 0.0
      %674 = vmatprep.subr.mxu0 0.0
      %675 = vmatpush1.xpose.msra.mxu0 0.0
      %676 = vmatprep.subr.mxu0 0.0
      %677 = vmatpush1.xpose.msra.mxu0 0.0
      %678 = vmatprep.subr.mxu0 0.0
      %679 = vmatpush1.xpose.msra.mxu0 0.0
      %680 = vmatprep.subr.mxu0 0.0
      %681 = vmatpush1.xpose.msra.mxu0 0.0
      %682 = vmatprep.subr.mxu0 0.0
      %683 = vmatpush1.xpose.msra.mxu0 0.0
      %684 = vmatprep.subr.mxu0 0.0
      %685 = vmatpush1.xpose.msra.mxu0 0.0
      %686 = vmatprep.subr.mxu0 0.0
      %687 = vmatpush1.xpose.msra.mxu0 0.0
      %688 = vmatprep.subr.mxu0 0.0
      %689 = vmatpush1.xpose.msra.mxu0 0.0
      %690 = vmatprep.subr.mxu0 0.0
      %691 = vmatpush1.xpose.msra.mxu0 0.0
      %692 = vmatprep.subr.mxu0 0.0
      %693 = vmatpush1.xpose.msra.mxu0 0.0
      %694 = vmatprep.subr.mxu0 0.0
      %695 = vmatpush1.xpose.msra.mxu0 0.0
      %696 = vmatprep.mubr.f32.mxu0 0.0
      %697 = vmatmul.mubr.f32.gmra.mrb[0].mxu0 %v630
      %v698 = vpop.f32.mrb[0].mxu0
      %v699 = vadd.f32 0.0, %v698
      %v700 = vpop.f32.mrb[0].mxu0
      %701 = vdwg.mxu0
      %v703 = vsel %vm54, %v344, 0
      %705 = vmatprep.subr.mxu0 0.0
      %706 = vmatpush1.xpose.msra.mxu0 %v703
      %707 = vmatprep.subr.mxu0 0.0
      %708 = vmatpush1.xpose.msra.mxu0 0.0
      %709 = vmatprep.subr.mxu0 0.0
      %710 = vmatpush1.xpose.msra.mxu0 0.0
      %711 = vmatprep.subr.mxu0 0.0
      %712 = vmatpush1.xpose.msra.mxu0 0.0
      %713 = vmatprep.subr.mxu0 0.0
      %714 = vmatpush1.xpose.msra.mxu0 0.0
      %715 = vmatprep.subr.mxu0 0.0
      %716 = vmatpush1.xpose.msra.mxu0 0.0
      %717 = vmatprep.subr.mxu0 0.0
      %718 = vmatpush1.xpose.msra.mxu0 0.0
      %719 = vmatprep.subr.mxu0 0.0
      %720 = vmatpush1.xpose.msra.mxu0 0.0
      %721 = vmatprep.subr.mxu0 0.0
      %722 = vmatpush1.xpose.msra.mxu0 0.0
      %723 = vmatprep.subr.mxu0 0.0
      %724 = vmatpush1.xpose.msra.mxu0 0.0
      %725 = vmatprep.subr.mxu0 0.0
      %726 = vmatpush1.xpose.msra.mxu0 0.0
      %727 = vmatprep.subr.mxu0 0.0
      %728 = vmatpush1.xpose.msra.mxu0 0.0
      %729 = vmatprep.subr.mxu0 0.0
      %730 = vmatpush1.xpose.msra.mxu0 0.0
      %731 = vmatprep.subr.mxu0 0.0
      %732 = vmatpush1.xpose.msra.mxu0 0.0
      %733 = vmatprep.subr.mxu0 0.0
      %734 = vmatpush1.xpose.msra.mxu0 0.0
      %735 = vmatprep.subr.mxu0 0.0
      %736 = vmatpush1.xpose.msra.mxu0 0.0
      %737 = vmatprep.subr.mxu0 0.0
      %738 = vmatpush1.xpose.msra.mxu0 0.0
      %739 = vmatprep.subr.mxu0 0.0
      %740 = vmatpush1.xpose.msra.mxu0 0.0
      %741 = vmatprep.subr.mxu0 0.0
      %742 = vmatpush1.xpose.msra.mxu0 0.0
      %743 = vmatprep.subr.mxu0 0.0
      %744 = vmatpush1.xpose.msra.mxu0 0.0
      %745 = vmatprep.subr.mxu0 0.0
      %746 = vmatpush1.xpose.msra.mxu0 0.0
      %747 = vmatprep.subr.mxu0 0.0
      %748 = vmatpush1.xpose.msra.mxu0 0.0
      %749 = vmatprep.subr.mxu0 0.0
      %750 = vmatpush1.xpose.msra.mxu0 0.0
      %751 = vmatprep.subr.mxu0 0.0
      %752 = vmatpush1.xpose.msra.mxu0 0.0
      %753 = vmatprep.subr.mxu0 0.0
      %754 = vmatpush1.xpose.msra.mxu0 0.0
      %755 = vmatprep.subr.mxu0 0.0
      %756 = vmatpush1.xpose.msra.mxu0 0.0
      %757 = vmatprep.subr.mxu0 0.0
      %758 = vmatpush1.xpose.msra.mxu0 0.0
      %759 = vmatprep.subr.mxu0 0.0
      %760 = vmatpush1.xpose.msra.mxu0 0.0
      %761 = vmatprep.subr.mxu0 0.0
      %762 = vmatpush1.xpose.msra.mxu0 0.0
      %763 = vmatprep.subr.mxu0 0.0
      %764 = vmatpush1.xpose.msra.mxu0 0.0
      %765 = vmatprep.subr.mxu0 0.0
      %766 = vmatpush1.xpose.msra.mxu0 0.0
      %767 = vmatprep.subr.mxu0 0.0
      %768 = vmatpush1.xpose.msra.mxu0 0.0
      %769 = vmatprep.mubr.f32.mxu0 0.0
      %770 = vmatmul.mubr.f32.gmra.mrb[0].mxu0 %v703
      %v771 = vpop.f32.mrb[0].mxu0
      %v772 = vadd.f32 %v626, %v771
      %v773 = vpop.f32.mrb[0].mxu0
      %774 = vdwg.mxu0
      %v776 = vsel %vm54, %v345, 0
      %778 = vmatprep.subr.mxu0 0.0
      %779 = vmatpush1.xpose.msra.mxu0 %v776
      %780 = vmatprep.subr.mxu0 0.0
      %781 = vmatpush1.xpose.msra.mxu0 0.0
      %782 = vmatprep.subr.mxu0 0.0
      %783 = vmatpush1.xpose.msra.mxu0 0.0
      %784 = vmatprep.subr.mxu0 0.0
      %785 = vmatpush1.xpose.msra.mxu0 0.0
      %786 = vmatprep.subr.mxu0 0.0
      %787 = vmatpush1.xpose.msra.mxu0 0.0
      %788 = vmatprep.subr.mxu0 0.0
      %789 = vmatpush1.xpose.msra.mxu0 0.0
      %790 = vmatprep.subr.mxu0 0.0
      %791 = vmatpush1.xpose.msra.mxu0 0.0
      %792 = vmatprep.subr.mxu0 0.0
      %793 = vmatpush1.xpose.msra.mxu0 0.0
      %794 = vmatprep.subr.mxu0 0.0
      %795 = vmatpush1.xpose.msra.mxu0 0.0
      %796 = vmatprep.subr.mxu0 0.0
      %797 = vmatpush1.xpose.msra.mxu0 0.0
      %798 = vmatprep.subr.mxu0 0.0
      %799 = vmatpush1.xpose.msra.mxu0 0.0
      %800 = vmatprep.subr.mxu0 0.0
      %801 = vmatpush1.xpose.msra.mxu0 0.0
      %802 = vmatprep.subr.mxu0 0.0
      %803 = vmatpush1.xpose.msra.mxu0 0.0
      %804 = vmatprep.subr.mxu0 0.0
      %805 = vmatpush1.xpose.msra.mxu0 0.0
      %806 = vmatprep.subr.mxu0 0.0
      %807 = vmatpush1.xpose.msra.mxu0 0.0
      %808 = vmatprep.subr.mxu0 0.0
      %809 = vmatpush1.xpose.msra.mxu0 0.0
      %810 = vmatprep.subr.mxu0 0.0
      %811 = vmatpush1.xpose.msra.mxu0 0.0
      %812 = vmatprep.subr.mxu0 0.0
      %813 = vmatpush1.xpose.msra.mxu0 0.0
      %814 = vmatprep.subr.mxu0 0.0
      %815 = vmatpush1.xpose.msra.mxu0 0.0
      %816 = vmatprep.subr.mxu0 0.0
      %817 = vmatpush1.xpose.msra.mxu0 0.0
      %818 = vmatprep.subr.mxu0 0.0
      %819 = vmatpush1.xpose.msra.mxu0 0.0
      %820 = vmatprep.subr.mxu0 0.0
      %821 = vmatpush1.xpose.msra.mxu0 0.0
      %822 = vmatprep.subr.mxu0 0.0
      %823 = vmatpush1.xpose.msra.mxu0 0.0
      %824 = vmatprep.subr.mxu0 0.0
      %825 = vmatpush1.xpose.msra.mxu0 0.0
      %826 = vmatprep.subr.mxu0 0.0
      %827 = vmatpush1.xpose.msra.mxu0 0.0
      %828 = vmatprep.subr.mxu0 0.0
      %829 = vmatpush1.xpose.msra.mxu0 0.0
      %830 = vmatprep.subr.mxu0 0.0
      %831 = vmatpush1.xpose.msra.mxu0 0.0
      %832 = vmatprep.subr.mxu0 0.0
      %833 = vmatpush1.xpose.msra.mxu0 0.0
      %834 = vmatprep.subr.mxu0 0.0
      %835 = vmatpush1.xpose.msra.mxu0 0.0
      %836 = vmatprep.subr.mxu0 0.0
      %837 = vmatpush1.xpose.msra.mxu0 0.0
      %838 = vmatprep.subr.mxu0 0.0
      %839 = vmatpush1.xpose.msra.mxu0 0.0
      %840 = vmatprep.subr.mxu0 0.0
      %841 = vmatpush1.xpose.msra.mxu0 0.0
      %842 = vmatprep.mubr.f32.mxu0 0.0
      %843 = vmatmul.mubr.f32.gmra.mrb[0].mxu0 %v776
      %v844 = vpop.f32.mrb[0].mxu0
      %v845 = vadd.f32 %v699, %v844
      %v846 = vpop.f32.mrb[0].mxu0
      %847 = vdwg.mxu0
      %v848 = vmul.f32 %v772, 0.17677669
      %v849 = vmul.f32 %v845, 0.17677669
      %vm850 = vcmask 64512
      %v851 = vsel %vm850, %v848, -inf
      %852 = vmax.xlane.f32.xlu0 %v851
      %v853 = vpop.xlane.xlu0 %852
      %v854 = vsel %vm850, %v849, -inf
      %855 = vmax.xlane.f32.xlu0 %v854
      %v856 = vpop.xlane.xlu0 %855
      %v857 = vsub.f32 %v848, %v853
      %v858 = vsub.f32 %v849, %v856
      %v859 = vmul.f32 %v857, 1.442695
      %v860 = vpow.pop %v859
      %v861 = vmul.f32 %v858, 1.442695
      %v862 = vpow.pop %v861
      %v863 = vsel %vm850, %v860, 0.0
      %864 = vadd.xlane.f32.xlu0 %v863
      %v865 = vpop.xlane.xlu0 %864
      %v866 = vsel %vm850, %v862, 0.0
      %867 = vadd.xlane.f32.xlu0 %v866
      %v868 = vpop.xlane.xlu0 %867
      %v869 = vrcp.pop %v865
      %v870 = vrcp.pop %v868
      %v871 = vmul.f32 %v860, %v869
      %v872 = vmul.f32 %v862, %v870
      %v874 = vsel %vm850, %v871, 0
      %876 = vmatprep.subr.mxu0 0.0
      %877 = vmatpush1.msra.mxu0 %v344
      %878 = vmatprep.subr.mxu0 0.0
      %879 = vmatpush1.msra.mxu0 0.0
      %880 = vmatprep.subr.mxu0 0.0
      %881 = vmatpush1.msra.mxu0 0.0
      %882 = vmatprep.subr.mxu0 0.0
      %883 = vmatpush1.msra.mxu0 0.0
      %884 = vmatprep.subr.mxu0 0.0
      %885 = vmatpush1.msra.mxu0 0.0
      %886 = vmatprep.subr.mxu0 0.0
      %887 = vmatpush1.msra.mxu0 0.0
      %888 = vmatprep.subr.mxu0 0.0
      %889 = vmatpush1.msra.mxu0 0.0
      %890 = vmatprep.subr.mxu0 0.0
      %891 = vmatpush1.msra.mxu0 0.0
      %892 = vmatprep.subr.mxu0 0.0
      %893 = vmatpush1.msra.mxu0 0.0
      %894 = vmatprep.subr.mxu0 0.0
      %895 = vmatpush1.msra.mxu0 0.0
      %896 = vmatprep.subr.mxu0 0.0
      %897 = vmatpush1.msra.mxu0 0.0
      %898 = vmatprep.subr.mxu0 0.0
      %899 = vmatpush1.msra.mxu0 0.0
      %900 = vmatprep.subr.mxu0 0.0
      %901 = vmatpush1.msra.mxu0 0.0
      %902 = vmatprep.subr.mxu0 0.0
      %903 = vmatpush1.msra.mxu0 0.0
      %904 = vmatprep.subr.mxu0 0.0
      %905 = vmatpush1.msra.mxu0 0.0
      %906 = vmatprep.subr.mxu0 0.0
      %907 = vmatpush1.msra.mxu0 0.0
      %908 = vmatprep.subr.mxu0 0.0
      %909 = vmatpush1.msra.mxu0 0.0
      %910 = vmatprep.subr.mxu0 0.0
      %911 = vmatpush1.msra.mxu0 0.0
      %912 = vmatprep.subr.mxu0 0.0
      %913 = vmatpush1.msra.mxu0 0.0
      %914 = vmatprep.subr.mxu0 0.0
      %915 = vmatpush1.msra.mxu0 0.0
      %916 = vmatprep.subr.mxu0 0.0
      %917 = vmatpush1.msra.mxu0 0.0
      %918 = vmatprep.subr.mxu0 0.0
      %919 = vmatpush1.msra.mxu0 0.0
      %920 = vmatprep.subr.mxu0 0.0
      %921 = vmatpush1.msra.mxu0 0.0
      %922 = vmatprep.subr.mxu0 0.0
      %923 = vmatpush1.msra.mxu0 0.0
      %924 = vmatprep.subr.mxu0 0.0
      %925 = vmatpush1.msra.mxu0 0.0
      %926 = vmatprep.subr.mxu0 0.0
      %927 = vmatpush1.msra.mxu0 0.0
      %928 = vmatprep.subr.mxu0 0.0
      %929 = vmatpush1.msra.mxu0 0.0
      %930 = vmatprep.subr.mxu0 0.0
      %931 = vmatpush1.msra.mxu0 0.0
      %932 = vmatprep.subr.mxu0 0.0
      %933 = vmatpush1.msra.mxu0 0.0
      %934 = vmatprep.subr.mxu0 0.0
      %935 = vmatpush1.msra.mxu0 0.0
      %936 = vmatprep.subr.mxu0 0.0
      %937 = vmatpush1.msra.mxu0 0.0
      %938 = vmatprep.subr.mxu0 0.0
      %939 = vmatpush1.msra.mxu0 0.0
      %940 = vmatprep.mubr.f32.mxu0 0.0
      %941 = vmatmul.mubr.f32.gmra.mrb[0].mxu0 %v874
      %v942 = vpop.f32.mrb[0].mxu0
      %v943 = vadd.f32 0.0, %v942
      %v944 = vpop.f32.mrb[0].mxu0
      %945 = vdwg.mxu0
      %v947 = vsel %vm850, %v872, 0
      %949 = vmatprep.subr.mxu0 0.0
      %950 = vmatpush1.msra.mxu0 %v345
      %951 = vmatprep.subr.mxu0 0.0
      %952 = vmatpush1.msra.mxu0 0.0
      %953 = vmatprep.subr.mxu0 0.0
      %954 = vmatpush1.msra.mxu0 0.0
      %955 = vmatprep.subr.mxu0 0.0
      %956 = vmatpush1.msra.mxu0 0.0
      %957 = vmatprep.subr.mxu0 0.0
      %958 = vmatpush1.msra.mxu0 0.0
      %959 = vmatprep.subr.mxu0 0.0
      %960 = vmatpush1.msra.mxu0 0.0
      %961 = vmatprep.subr.mxu0 0.0
      %962 = vmatpush1.msra.mxu0 0.0
      %963 = vmatprep.subr.mxu0 0.0
      %964 = vmatpush1.msra.mxu0 0.0
      %965 = vmatprep.subr.mxu0 0.0
      %966 = vmatpush1.msra.mxu0 0.0
      %967 = vmatprep.subr.mxu0 0.0
      %968 = vmatpush1.msra.mxu0 0.0
      %969 = vmatprep.subr.mxu0 0.0
      %970 = vmatpush1.msra.mxu0 0.0
      %971 = vmatprep.subr.mxu0 0.0
      %972 = vmatpush1.msra.mxu0 0.0
      %973 = vmatprep.subr.mxu0 0.0
      %974 = vmatpush1.msra.mxu0 0.0
      %975 = vmatprep.subr.mxu0 0.0
      %976 = vmatpush1.msra.mxu0 0.0
      %977 = vmatprep.subr.mxu0 0.0
      %978 = vmatpush1.msra.mxu0 0.0
      %979 = vmatprep.subr.mxu0 0.0
      %980 = vmatpush1.msra.mxu0 0.0
      %981 = vmatprep.subr.mxu0 0.0
      %982 = vmatpush1.msra.mxu0 0.0
      %983 = vmatprep.subr.mxu0 0.0
      %984 = vmatpush1.msra.mxu0 0.0
      %985 = vmatprep.subr.mxu0 0.0
      %986 = vmatpush1.msra.mxu0 0.0
      %987 = vmatprep.subr.mxu0 0.0
      %988 = vmatpush1.msra.mxu0 0.0
      %989 = vmatprep.subr.mxu0 0.0
      %990 = vmatpush1.msra.mxu0 0.0
      %991 = vmatprep.subr.mxu0 0.0
      %992 = vmatpush1.msra.mxu0 0.0
      %993 = vmatprep.subr.mxu0 0.0
      %994 = vmatpush1.msra.mxu0 0.0
      %995 = vmatprep.subr.mxu0 0.0
      %996 = vmatpush1.msra.mxu0 0.0
      %997 = vmatprep.subr.mxu0 0.0
      %998 = vmatpush1.msra.mxu0 0.0
      %999 = vmatprep.subr.mxu0 0.0
      %1000 = vmatpush1.msra.mxu0 0.0
      %1001 = vmatprep.subr.mxu0 0.0
      %1002 = vmatpush1.msra.mxu0 0.0
      %1003 = vmatprep.subr.mxu0 0.0
      %1004 = vmatpush1.msra.mxu0 0.0
      %1005 = vmatprep.subr.mxu0 0.0
      %1006 = vmatpush1.msra.mxu0 0.0
      %1007 = vmatprep.subr.mxu0 0.0
      %1008 = vmatpush1.msra.mxu0 0.0
      %1009 = vmatprep.subr.mxu0 0.0
      %1010 = vmatpush1.msra.mxu0 0.0
      %1011 = vmatprep.subr.mxu0 0.0
      %1012 = vmatpush1.msra.mxu0 0.0
      %1013 = vmatprep.mubr.f32.mxu0 0.0
      %1014 = vmatmul.mubr.f32.gmra.mrb[0].mxu0 %v947
      %v1015 = vpop.f32.mrb[0].mxu0
      %v1016 = vadd.f32 0.0, %v1015
      %v1017 = vpop.f32.mrb[0].mxu0
      %1018 = vdwg.mxu0
      %1019 = vmatprep.subr.mxu0 0.0
      %1020 = vmatpush1.msra.mxu0 %v554
      %1021 = vmatprep.subr.mxu0 0.0
      %1022 = vmatpush1.msra.mxu0 0.0
      %1023 = vmatprep.subr.mxu0 0.0
      %1024 = vmatpush1.msra.mxu0 0.0
      %1025 = vmatprep.subr.mxu0 0.0
      %1026 = vmatpush1.msra.mxu0 0.0
      %1027 = vmatprep.subr.mxu0 0.0
      %1028 = vmatpush1.msra.mxu0 0.0
      %1029 = vmatprep.subr.mxu0 0.0
      %1030 = vmatpush1.msra.mxu0 0.0
      %1031 = vmatprep.subr.mxu0 0.0
      %1032 = vmatpush1.msra.mxu0 0.0
      %1033 = vmatprep.subr.mxu0 0.0
      %1034 = vmatpush1.msra.mxu0 0.0
      %1035 = vmatprep.subr.mxu0 0.0
      %1036 = vmatpush1.msra.mxu0 0.0
      %1037 = vmatprep.subr.mxu0 0.0
      %1038 = vmatpush1.msra.mxu0 0.0
      %1039 = vmatprep.subr.mxu0 0.0
      %1040 = vmatpush1.msra.mxu0 0.0
      %1041 = vmatprep.subr.mxu0 0.0
      %1042 = vmatpush1.msra.mxu0 0.0
      %1043 = vmatprep.subr.mxu0 0.0
      %1044 = vmatpush1.msra.mxu0 0.0
      %1045 = vmatprep.subr.mxu0 0.0
      %1046 = vmatpush1.msra.mxu0 0.0
      %1047 = vmatprep.subr.mxu0 0.0
      %1048 = vmatpush1.msra.mxu0 0.0
      %1049 = vmatprep.subr.mxu0 0.0
      %1050 = vmatpush1.msra.mxu0 0.0
      %1051 = vmatprep.subr.mxu0 0.0
      %1052 = vmatpush1.msra.mxu0 0.0
      %1053 = vmatprep.subr.mxu0 0.0
      %1054 = vmatpush1.msra.mxu0 0.0
      %1055 = vmatprep.subr.mxu0 0.0
      %1056 = vmatpush1.msra.mxu0 0.0
      %1057 = vmatprep.subr.mxu0 0.0
      %1058 = vmatpush1.msra.mxu0 0.0
      %1059 = vmatprep.subr.mxu0 0.0
      %1060 = vmatpush1.msra.mxu0 0.0
      %1061 = vmatprep.subr.mxu0 0.0
      %1062 = vmatpush1.msra.mxu0 0.0
      %1063 = vmatprep.subr.mxu0 0.0
      %1064 = vmatpush1.msra.mxu0 0.0
      %1065 = vmatprep.subr.mxu0 0.0
      %1066 = vmatpush1.msra.mxu0 0.0
      %1067 = vmatprep.subr.mxu0 0.0
      %1068 = vmatpush1.msra.mxu0 0.0
      %1069 = vmatprep.subr.mxu0 0.0
      %1070 = vmatpush1.msra.mxu0 0.0
      %1071 = vmatprep.subr.mxu0 0.0
      %1072 = vmatpush1.msra.mxu0 0.0
      %1073 = vmatprep.subr.mxu0 0.0
      %1074 = vmatpush1.msra.mxu0 0.0
      %1075 = vmatprep.subr.mxu0 0.0
      %1076 = vmatpush1.msra.mxu0 0.0
      %1077 = vmatprep.subr.mxu0 0.0
      %1078 = vmatpush1.msra.mxu0 0.0
      %1079 = vmatprep.subr.mxu0 0.0
      %1080 = vmatpush1.msra.mxu0 0.0
      %1081 = vmatprep.subr.mxu0 0.0
      %1082 = vmatpush1.msra.mxu0 0.0
      %1083 = vmatprep.mubr.f32.mxu0 0.0
      %1084 = vmatmul.mubr.f32.gmra.mrb[0].mxu0 %v874
      %v1085 = vpop.f32.mrb[0].mxu0
      %v1086 = vadd.f32 0.0, %v1085
      %v1087 = vpop.f32.mrb[0].mxu0
      %1088 = vdwg.mxu0
      %1089 = vmatprep.subr.mxu0 0.0
      %1090 = vmatpush1.msra.mxu0 %v555
      %1091 = vmatprep.subr.mxu0 0.0
      %1092 = vmatpush1.msra.mxu0 0.0
      %1093 = vmatprep.subr.mxu0 0.0
      %1094 = vmatpush1.msra.mxu0 0.0
      %1095 = vmatprep.subr.mxu0 0.0
      %1096 = vmatpush1.msra.mxu0 0.0
      %1097 = vmatprep.subr.mxu0 0.0
      %1098 = vmatpush1.msra.mxu0 0.0
      %1099 = vmatprep.subr.mxu0 0.0
      %1100 = vmatpush1.msra.mxu0 0.0
      %1101 = vmatprep.subr.mxu0 0.0
      %1102 = vmatpush1.msra.mxu0 0.0
      %1103 = vmatprep.subr.mxu0 0.0
      %1104 = vmatpush1.msra.mxu0 0.0
      %1105 = vmatprep.subr.mxu0 0.0
      %1106 = vmatpush1.msra.mxu0 0.0
      %1107 = vmatprep.subr.mxu0 0.0
      %1108 = vmatpush1.msra.mxu0 0.0
      %1109 = vmatprep.subr.mxu0 0.0
      %1110 = vmatpush1.msra.mxu0 0.0
      %1111 = vmatprep.subr.mxu0 0.0
      %1112 = vmatpush1.msra.mxu0 0.0
      %1113 = vmatprep.subr.mxu0 0.0
      %1114 = vmatpush1.msra.mxu0 0.0
      %1115 = vmatprep.subr.mxu0 0.0
      %1116 = vmatpush1.msra.mxu0 0.0
      %1117 = vmatprep.subr.mxu0 0.0
      %1118 = vmatpush1.msra.mxu0 0.0
      %1119 = vmatprep.subr.mxu0 0.0
      %1120 = vmatpush1.msra.mxu0 0.0
      %1121 = vmatprep.subr.mxu0 0.0
      %1122 = vmatpush1.msra.mxu0 0.0
      %1123 = vmatprep.subr.mxu0 0.0
      %1124 = vmatpush1.msra.mxu0 0.0
      %1125 = vmatprep.subr.mxu0 0.0
      %1126 = vmatpush1.msra.mxu0 0.0
      %1127 = vmatprep.subr.mxu0 0.0
      %1128 = vmatpush1.msra.mxu0 0.0
      %1129 = vmatprep.subr.mxu0 0.0
      %1130 = vmatpush1.msra.mxu0 0.0
      %1131 = vmatprep.subr.mxu0 0.0
      %1132 = vmatpush1.msra.mxu0 0.0
      %1133 = vmatprep.subr.mxu0 0.0
      %1134 = vmatpush1.msra.mxu0 0.0
      %1135 = vmatprep.subr.mxu0 0.0
      %1136 = vmatpush1.msra.mxu0 0.0
      %1137 = vmatprep.subr.mxu0 0.0
      %1138 = vmatpush1.msra.mxu0 0.0
      %1139 = vmatprep.subr.mxu0 0.0
      %1140 = vmatpush1.msra.mxu0 0.0
      %1141 = vmatprep.subr.mxu0 0.0
      %1142 = vmatpush1.msra.mxu0 0.0
      %1143 = vmatprep.subr.mxu0 0.0
      %1144 = vmatpush1.msra.mxu0 0.0
      %1145 = vmatprep.subr.mxu0 0.0
      %1146 = vmatpush1.msra.mxu0 0.0
      %1147 = vmatprep.subr.mxu0 0.0
      %1148 = vmatpush1.msra.mxu0 0.0
      %1149 = vmatprep.subr.mxu0 0.0
      %1150 = vmatpush1.msra.mxu0 0.0
      %1151 = vmatprep.subr.mxu0 0.0
      %1152 = vmatpush1.msra.mxu0 0.0
      %1153 = vmatprep.mubr.f32.mxu0 0.0
      %1154 = vmatmul.mubr.f32.gmra.mrb[0].mxu0 %v947
      %v1155 = vpop.f32.mrb[0].mxu0
      %v1156 = vadd.f32 0.0, %v1155
      %v1157 = vpop.f32.mrb[0].mxu0
      %1158 = vdwg.mxu0
      %v1159 = vsel %vm54, %v943, 0.0
      %1160 = vadd.xlane.f32.xlu0 %v1159
      %v1161 = vpop.xlane.xlu0 %1160
      %v1162 = vsel %vm54, %v1016, 0.0
      %1163 = vadd.xlane.f32.xlu0 %v1162
      %v1164 = vpop.xlane.xlu0 %1163
      %v1165 = vsel %vm54, %v1086, 0.0
      %1166 = vadd.xlane.f32.xlu0 %v1165
      %v1167 = vpop.xlane.xlu0 %1166
      %v1168 = vsel %vm54, %v1156, 0.0
      %1169 = vadd.xlane.f32.xlu0 %v1168
      %v1170 = vpop.xlane.xlu0 %1169
      %v1171 = vadd.f32 %v1161, %v1167
      %v1172 = vadd.f32 %v1164, %v1170
      %v1173 = vrcp.pop 64.0
      %v1174 = vmul.f32 %v1171, %v1173
      %v1175 = vmul.f32 %v1172, %v1173
      %v1176 = vsub.f32 %v943, %v1174
      %v1177 = vsub.f32 %v1016, %v1175
      %v1178 = vsub.f32 %v1086, %v1174
      %v1179 = vsub.f32 %v1156, %v1175
      %v1180 = vmul.f32 %v1176, %v1176
      %v1181 = vmul.f32 %v1177, %v1177
      %v1182 = vsel %vm54, %v1180, 0.0
      %1183 = vadd.xlane.f32.xlu0 %v1182
      %v1184 = vpop.xlane.xlu0 %1183
      %v1185 = vsel %vm54, %v1181, 0.0
      %1186 = vadd.xlane.f32.xlu0 %v1185
      %v1187 = vpop.xlane.xlu0 %1186
      %v1188 = vmul.f32 %v1178, %v1178
      %v1189 = vmul.f32 %v1179, %v1179
      %v1190 = vsel %vm54, %v1188, 0.0
      %1191 = vadd.xlane.f32.xlu0 %v1190
      %v1192 = vpop.xlane.xlu0 %1191
      %v1193 = vsel %vm54, %v1189, 0.0
      %1194 = vadd.xlane.f32.xlu0 %v1193
      %v1195 = vpop.xlane.xlu0 %1194
      %v1196 = vadd.f32 %v1184, %v1192
      %v1197 = vadd.f32 %v1187, %v1195
      %v1198 = vmul.f32 %v1196, %v1173
      %v1199 = vmul.f32 %v1197, %v1173
      %v1200 = vadd.f32 %v1198, 1e-05
      %v1201 = vadd.f32 %v1199, 1e-05
      %v1202 = vrsqrt.pop %v1200
      %v1203 = vrsqrt.pop %v1201
      %v1204 = vmul.f32 %v1176, %v1202
      %v1205 = vmul.f32 %v1177, %v1203
      %v1206 = vld [vmem:[%s3] sm:$0x1]
      %v1208 = vlaneseq
      %v1209 = vshrl.u32 %v1208, 7
      %v1210 = vsub.s32 0, %v1209
      %v1211 = vrot.slane %v1206, %v1210
      %v1213 = vmul.f32 %v1204, %v1211
      %v1214 = vmul.f32 %v1205, %v1211
      %v1215 = vld [vmem:[%s5] sm:$0x1]
      %v1217 = vlaneseq
      %v1218 = vshrl.u32 %v1217, 7
      %v1219 = vsub.s32 0, %v1218
      %v1220 = vrot.slane %v1215, %v1219
      %v1222 = vadd.f32 %v1213, %v1220
      %v1223 = vadd.f32 %v1214, %v1220
      %v1224 = vmul.f32 %v1178, %v1202
      %v1225 = vmul.f32 %v1179, %v1203
      %v1226 = vld [vmem:[%s4] sm:$0x1]
      %v1228 = vlaneseq
      %v1229 = vshrl.u32 %v1228, 7
      %v1230 = vsub.s32 0, %v1229
      %v1231 = vrot.slane %v1226, %v1230
      %v1233 = vmul.f32 %v1224, %v1231
      %v1234 = vmul.f32 %v1225, %v1231
      %v1235 = vld [vmem:[%s6] sm:$0x1]
      %v1237 = vlaneseq
      %v1238 = vshrl.u32 %v1237, 7
      %v1239 = vsub.s32 0, %v1238
      %v1240 = vrot.slane %v1235, %v1239
      %v1242 = vadd.f32 %v1233, %v1240
      %v1243 = vadd.f32 %v1234, %v1240
      %v1244 = vpack.c.bf16 %v1223, %v1222
      %1245 = vst.msk [vmem:[#allocation2] sm:$0xff] %vm54, %v1244
      %v1246 = vpack.c.bf16 %v1243, %v1242
      %1247 = vst.msk [vmem:[#allocation3] sm:$0xff] %vm54, %v1246
    $region45: #{quantum_llm_forward.1} parent=1 // pred_fallthru
      _
    %v1248 = vld [vmem:[%s9] sm:$0x1]
    %v1249 = vld [vmem:[#allocation2] sm:$0xff]
    %v1250 = vld [vmem:[%s7] sm:$0xf]
    %v1251 = vld [vmem:[%s7 + $0x4] sm:$0xf]
    %v1252 = vld [vmem:[%s7 + $0x8] sm:$0xf]
    %v1253 = vld [vmem:[%s7 + $0xc] sm:$0xf]
    %v1254 = vld [vmem:[#allocation3] sm:$0xff]
    %v1255 = vld [vmem:[%s8] sm:$0xf]
    %v1256 = vld [vmem:[%s8 + $0x4] sm:$0xf]
    %v1257 = vld [vmem:[%s8 + $0x8] sm:$0xf]
    %v1258 = vld [vmem:[%s8 + $0xc] sm:$0xf]
    %v1263 = vunpack.c.l.b16 %v1255
    %v1264 = vunpack.c.l.b16 %v1256
    %v1265 = vunpack.c.l.b16 %v1257
    %v1266 = vunpack.c.l.b16 %v1258
    %v1267 = vpack.c.b16 %v1264, %v1263
    %v1268 = vpack.c.b16 %v1266, %v1265
    %vm1271 = vcmask 261120
    %v1273 = vsel %vm1271, %v1254, 0
    %1275 = vmatprep.subr.bf16.mxu0 0
    %1276 = vmatpush1.bf16.msra.mxu0 %v1267
    %1277 = vmatprep.subr.bf16.mxu0 0
    %1278 = vmatpush1.bf16.msra.mxu0 %v1268
    %1279 = vmatprep.subr.bf16.mxu0 0
    %1280 = vmatpush1.bf16.msra.mxu0 0
    %1281 = vmatprep.subr.bf16.mxu0 0
    %1282 = vmatpush1.bf16.msra.mxu0 0
    %1283 = vmatprep.subr.bf16.mxu0 0
    %1284 = vmatpush1.bf16.msra.mxu0 0
    %1285 = vmatprep.subr.bf16.mxu0 0
    %1286 = vmatpush1.bf16.msra.mxu0 0
    %1287 = vmatprep.subr.bf16.mxu0 0
    %1288 = vmatpush1.bf16.msra.mxu0 0
    %1289 = vmatprep.subr.bf16.mxu0 0
    %1290 = vmatpush1.bf16.msra.mxu0 0
    %1291 = vmatprep.subr.bf16.mxu0 0
    %1292 = vmatpush1.bf16.msra.mxu0 0
    %1293 = vmatprep.subr.bf16.mxu0 0
    %1294 = vmatpush1.bf16.msra.mxu0 0
    %1295 = vmatprep.subr.bf16.mxu0 0
    %1296 = vmatpush1.bf16.msra.mxu0 0
    %1297 = vmatprep.subr.bf16.mxu0 0
    %1298 = vmatpush1.bf16.msra.mxu0 0
    %1299 = vmatprep.subr.bf16.mxu0 0
    %1300 = vmatpush1.bf16.msra.mxu0 0
    %1301 = vmatprep.subr.bf16.mxu0 0
    %1302 = vmatpush1.bf16.msra.mxu0 0
    %1303 = vmatprep.subr.bf16.mxu0 0
    %1304 = vmatpush1.bf16.msra.mxu0 0
    %1305 = vmatprep.subr.bf16.mxu0 0
    %1306 = vmatpush1.bf16.msra.mxu0 0
    %1307 = vmatprep.mubr.bf16.mxu0 0
    %1308 = vmatmul.mubr.bf16.gmra.mrb[0].mxu0 %v1273
    %v1309 = vpop.f32.mrb[0].mxu0
    %v1310 = vadd.f32 0.0, %v1309
    %v1311 = vpop.f32.mrb[0].mxu0
    %v1312 = vpop.f32.mrb[0].mxu0
    %v1313 = vadd.f32 0.0, %v1312
    %v1314 = vpop.f32.mrb[0].mxu0
    %1315 = vdwg.mxu0
    %v1320 = vunpack.c.l.b16 %v1250
    %v1321 = vunpack.c.l.b16 %v1251
    %v1322 = vunpack.c.l.b16 %v1252
    %v1323 = vunpack.c.l.b16 %v1253
    %v1324 = vpack.c.b16 %v1321, %v1320
    %v1325 = vpack.c.b16 %v1323, %v1322
    %v1329 = vsel %vm1271, %v1249, 0
    %1331 = vmatprep.subr.bf16.mxu0 0
    %1332 = vmatpush1.bf16.msra.mxu0 %v1324
    %1333 = vmatprep.subr.bf16.mxu0 0
    %1334 = vmatpush1.bf16.msra.mxu0 %v1325
    %1335 = vmatprep.subr.bf16.mxu0 0
    %1336 = vmatpush1.bf16.msra.mxu0 0
    %1337 = vmatprep.subr.bf16.mxu0 0
    %1338 = vmatpush1.bf16.msra.mxu0 0
    %1339 = vmatprep.subr.bf16.mxu0 0
    %1340 = vmatpush1.bf16.msra.mxu0 0
    %1341 = vmatprep.subr.bf16.mxu0 0
    %1342 = vmatpush1.bf16.msra.mxu0 0
    %1343 = vmatprep.subr.bf16.mxu0 0
    %1344 = vmatpush1.bf16.msra.mxu0 0
    %1345 = vmatprep.subr.bf16.mxu0 0
    %1346 = vmatpush1.bf16.msra.mxu0 0
    %1347 = vmatprep.subr.bf16.mxu0 0
    %1348 = vmatpush1.bf16.msra.mxu0 0
    %1349 = vmatprep.subr.bf16.mxu0 0
    %1350 = vmatpush1.bf16.msra.mxu0 0
    %1351 = vmatprep.subr.bf16.mxu0 0
    %1352 = vmatpush1.bf16.msra.mxu0 0
    %1353 = vmatprep.subr.bf16.mxu0 0
    %1354 = vmatpush1.bf16.msra.mxu0 0
    %1355 = vmatprep.subr.bf16.mxu0 0
    %1356 = vmatpush1.bf16.msra.mxu0 0
    %1357 = vmatprep.subr.bf16.mxu0 0
    %1358 = vmatpush1.bf16.msra.mxu0 0
    %1359 = vmatprep.subr.bf16.mxu0 0
    %1360 = vmatpush1.bf16.msra.mxu0 0
    %1361 = vmatprep.subr.bf16.mxu0 0
    %1362 = vmatpush1.bf16.msra.mxu0 0
    %1363 = vmatprep.mubr.bf16.mxu0 0
    %1364 = vmatmul.mubr.bf16.gmra.mrb[0].mxu0 %v1329
    %v1365 = vpop.f32.mrb[0].mxu0
    %v1366 = vadd.f32 %v1310, %v1365
    %v1367 = vpop.f32.mrb[0].mxu0
    %v1368 = vpop.f32.mrb[0].mxu0
    %v1369 = vadd.f32 %v1313, %v1368
    %v1370 = vpop.f32.mrb[0].mxu0
    %1371 = vdwg.mxu0
    %v1373 = vlaneseq
    %v1374 = vshrl.u32 %v1373, 7
    %v1375 = vsub.s32 0, %v1374
    %v1376 = vrot.slane %v1248, %v1375
    %v1378 = vadd.f32 %v1366, %v1376
    %v1379 = vadd.f32 %v1369, %v1376
    %1380 = vst [vmem:[#allocation4] sm:$0xff] %v1378
    %1381 = vst [vmem:[#allocation4 + $0x8] sm:$0xff] %v1379
    // Predicated region
    $region46: #{quantum_llm_forward.1} parent=1 // pred_check
      _
    $region47: #{quantum_llm_forward.1} parent=1 // pred_check_branch
      %1383 = sbr.rel (0) target = $region49
    $region48: #{quantum_llm_forward.1} parent=1 // pred_region
      %s1385 = ssub.s32 256, 256
      %1386 = vsyncadd [#allocation5], %s1385
      %s1387 = sshll.u32 [#allocation4], 4
      %s1388 = int_to_ptr.vmem [resolvable:$true] %s1387
      %1393 = dma.vmem_to_hbm [thread:$0]  %s1388, 256, %s10, [#allocation5], 128, 128, 8
    $region49: #{quantum_llm_forward.1} parent=1 // pred_fallthru
      _
    // Predicated region
    $region50: #{quantum_llm_forward.1} parent=1 // pred_check
      _
    $region51: #{quantum_llm_forward.1} parent=1 // pred_check_branch
      %1395 = sbr.rel (0) target = $region53
    $region52: #{quantum_llm_forward.1} parent=1 // pred_region
      %1396 = dma.done [#allocation5], 256
    $region53: #{quantum_llm_forward.1} parent=1 // pred_fallthru
      _
    %1397 = vsyncpa [#allocation5], 1

</llo_original>
